<compile_context>
chip_gen: v6e
topology: v6e:2x2x1
jax: 0.10.0
libtpu: 0.0.40
codegen_flags: <defaults>
</compile_context>

<pallas_src>
import jax
import jax.numpy as jnp
from jax.experimental import pallas as pl
from jax.experimental.pallas import tpu as pltpu

LANE = 128  # TPU lane width; every GEMM output dim is padded to this.


# ---------------------------------------------------------------------------
# Pallas kernels
# ---------------------------------------------------------------------------
def _conv_relu_pool_kernel(p0_ref, p1_ref, p2_ref, p3_ref, w_ref, b_ref, o_ref):
    """Fused conv-as-GEMM + bias + ReLU + 2x2 maxpool.

    p0..p3 are im2col patch matrices for the four positions inside each 2x2
    pooling window.  max_i(relu(P_i @ W + b)) == relu(max_i(P_i @ W) + b),
    so the pool is just an elementwise max of four MXU results.
    """
    w = w_ref[...]
    acc = jnp.dot(p0_ref[...], w, preferred_element_type=jnp.float32)
    acc = jnp.maximum(acc, jnp.dot(p1_ref[...], w, preferred_element_type=jnp.float32))
    acc = jnp.maximum(acc, jnp.dot(p2_ref[...], w, preferred_element_type=jnp.float32))
    acc = jnp.maximum(acc, jnp.dot(p3_ref[...], w, preferred_element_type=jnp.float32))
    o_ref[...] = jnp.maximum(acc + b_ref[...], 0.0).astype(o_ref.dtype)


def _dense_stack_kernel(x_ref, w1_ref, b1_ref, w2_ref, b2_ref, w3_ref, b3_ref, o_ref):
    """dense1 -> ReLU -> dense2 -> ReLU -> dense3; intermediates stay in VMEM."""
    h = jnp.dot(x_ref[...], w1_ref[...], preferred_element_type=jnp.float32) + b1_ref[...]
    h = jnp.maximum(h, 0.0)
    h = jnp.dot(h, w2_ref[...], preferred_element_type=jnp.float32) + b2_ref[...]
    h = jnp.maximum(h, 0.0)
    h = jnp.dot(h, w3_ref[...], preferred_element_type=jnp.float32) + b3_ref[...]
    o_ref[...] = h.astype(o_ref.dtype)


# ---------------------------------------------------------------------------
# Generic row-tiled pallas_call wrapper
# ---------------------------------------------------------------------------
def _call_rowwise(kernel, row_args, const_args, n_out, *, tm=256):
    """Run kernel(*row_refs, *const_refs, o_ref), tiled over the row (M) axis.

    row_args:   2-D arrays sharing the same leading M dim (tiled over the grid).
    const_args: 2-D arrays resident for every grid step (weights / bias).
    Returns an (M, n_out) float32 array.
    """
    m = row_args[0].shape[0]
    # Advisory cost estimate so XLA can overlap surrounding glue ops.
    flops = 2 * m * len(row_args) * sum(
        a.shape[0] * a.shape[1] for a in const_args if a.shape[0] > 1)

    if m <= tm:
        ce = pl.CostEstimate(
            flops=flops, transcendentals=0,
            bytes_accessed=4 * (sum(a.size for a in (*row_args, *const_args))
                                + m * n_out))
        return pl.pallas_call(
            kernel,
            out_shape=jax.ShapeDtypeStruct((m, n_out), jnp.float32),
            cost_estimate=ce,
        )(*row_args, *const_args)

    mp = pl.cdiv(m, tm) * tm
    if mp != m:  # pad junk rows; sliced off below (rows are independent)
        row_args = [jnp.pad(a, ((0, mp - m), (0, 0))) for a in row_args]
    ce = pl.CostEstimate(
        flops=flops, transcendentals=0,
        bytes_accessed=4 * (sum(a.size for a in (*row_args, *const_args))
                            + mp * n_out))
    in_specs = [pl.BlockSpec((tm, a.shape[1]), lambda i: (i, 0)) for a in row_args]
    in_specs += [pl.BlockSpec(a.shape, lambda i, nd=a.ndim: (0,) * nd)
                 for a in const_args]
    out = pl.pallas_call(
        kernel,
        out_shape=jax.ShapeDtypeStruct((mp, n_out), jnp.float32),
        grid=(mp // tm,),
        in_specs=in_specs,
        out_specs=pl.BlockSpec((tm, n_out), lambda i: (i, 0)),
        compiler_params=pltpu.CompilerParams(
            dimension_semantics=("parallel",)),
        cost_estimate=ce,
    )(*row_args, *const_args)
    return out[:m]


# ---------------------------------------------------------------------------
# XLA glue: im2col corner-patch extraction (NHWC)
# ---------------------------------------------------------------------------
def _pool_corner_patches(x_nhwc, k):
    """x: (B, H, W, C) -> four patch matrices, one per 2x2-pool corner.

    Each matrix is (B*PH*PW, k*k*C) with rows ordered (b, ph, pw) and columns
    ordered (kh, kw, C) to match the packed conv weight layout.
    """
    B, H, W, C = x_nhwc.shape
    OH, OW = H - k + 1, W - k + 1
    PH, PW = OH // 2, OW // 2
    cols = [x_nhwc[:, i:i + OH, j:j + OW, :] for i in range(k) for j in range(k)]
    p = jnp.stack(cols, axis=3)                      # (B, OH, OW, k*k, C)
    corners = []
    for ci in (0, 1):
        for cj in (0, 1):
            q = p[:, ci::2, cj::2]                   # (B, PH, PW, k*k, C)
            corners.append(q.reshape(B * PH * PW, k * k * C))
    return corners, PH, PW


# ---------------------------------------------------------------------------
# Parameters: torch-layout init + one-time packing (transpose / lane padding)
# ---------------------------------------------------------------------------
def init_lenet_params(key):
    ks = jax.random.split(key, 10)
    return {
        # conv weights: (OC, IC, kh, kw), matching torch.nn.Conv2d
        "conv1_w": jax.random.normal(ks[0], (6, 3, 5, 5), jnp.float32) * 0.1,
        "conv1_b": jax.random.normal(ks[1], (6,), jnp.float32) * 0.1,
        "conv2_w": jax.random.normal(ks[2], (16, 6, 5, 5), jnp.float32) * 0.1,
        "conv2_b": jax.random.normal(ks[3], (16,), jnp.float32) * 0.1,
        # dense weights: (out, in), matching torch.nn.Linear
        "dense1_w": jax.random.normal(ks[4], (120, 400), jnp.float32) * 0.05,
        "dense1_b": jax.random.normal(ks[5], (120,), jnp.float32) * 0.05,
        "dense2_w": jax.random.normal(ks[6], (84, 120), jnp.float32) * 0.05,
        "dense2_b": jax.random.normal(ks[7], (84,), jnp.float32) * 0.05,
        "dense3_w": jax.random.normal(ks[8], (10, 84), jnp.float32) * 0.05,
        "dense3_b": jax.random.normal(ks[9], (10,), jnp.float32) * 0.05,
    }


def _pad_lane(a, n=LANE):
    return jnp.pad(a, [(0, 0)] * (a.ndim - 1) + [(0, n - a.shape[-1])])


def pack_params(raw):
    """One-time packing: conv weights -> (k*k*IC, 128); dense -> (in, 128-padded)."""
    def conv_w(w):                                    # (OC, IC, k, k)
        OC, IC, k, _ = w.shape
        w2 = jnp.transpose(w, (2, 3, 1, 0)).reshape(k * k * IC, OC)
        return _pad_lane(w2)                          # (k*k*IC, 128)

    def vec(b):
        return _pad_lane(b.reshape(1, -1))            # (1, 128)

    # dense1 consumes the NHWC-flattened 400-vector: permute torch's (c,h,w)
    # input ordering to (h,w,c) once, here.
    d1 = raw["dense1_w"].reshape(120, 16, 5, 5).transpose(0, 2, 3, 1).reshape(120, 400)
    return {
        "conv1_w": conv_w(raw["conv1_w"]), "conv1_b": vec(raw["conv1_b"]),
        "conv2_w": conv_w(raw["conv2_w"]), "conv2_b": vec(raw["conv2_b"]),
        "d1_w": _pad_lane(d1.T),                                   # (400, 128)
        "d1_b": vec(raw["dense1_b"]),
        "d2_w": jnp.pad(raw["dense2_w"].T, ((0, LANE - 120), (0, LANE - 84))),
        "d2_b": vec(raw["dense2_b"]),
        "d3_w": jnp.pad(raw["dense3_w"].T, ((0, LANE - 84), (0, LANE - 10))),
        "d3_b": vec(raw["dense3_b"]),
    }


# ---------------------------------------------------------------------------
# Forward pass
# ---------------------------------------------------------------------------
def lenet_forward(packed, x_nchw):
    B = x_nchw.shape[0]
    x = jnp.transpose(x_nchw, (0, 2, 3, 1))                       # NHWC

    # conv1 + relu1 + pool1 (fused)
    corners, PH, PW = _pool_corner_patches(x, 5)                  # 4 x (B*196, 75)
    h = _call_rowwise(_conv_relu_pool_kernel, corners,
                      [packed["conv1_w"], packed["conv1_b"]], LANE)
    h = h[:, :6].reshape(B, PH, PW, 6)                            # (B, 14, 14, 6)

    # conv2 + relu2 + pool2 (fused)
    corners, PH, PW = _pool_corner_patches(h, 5)                  # 4 x (B*25, 150)
    h = _call_rowwise(_conv_relu_pool_kernel, corners,
                      [packed["conv2_w"], packed["conv2_b"]], LANE)
    flat = h[:, :16].reshape(B, 400)                              # NHWC flatten

    # dense1 -> relu3 -> dense2 -> relu4 -> dense3 (fused)
    logits = _call_rowwise(
        _dense_stack_kernel, [flat],
        [packed["d1_w"], packed["d1_b"], packed["d2_w"], packed["d2_b"],
         packed["d3_w"], packed["d3_b"]], LANE)
    return logits[:, :10]


# ---------------------------------------------------------------------------
# Pure-JAX reference (mirrors the PyTorch module exactly)
# ---------------------------------------------------------------------------
def lenet_reference(raw, x):
    def conv(h, w, b):
        out = jax.lax.conv_general_dilated(
            h, w, window_strides=(1, 1), padding="VALID",
            dimension_numbers=("NCHW", "OIHW", "NCHW"))
        return out + b[None, :, None, None]

    def pool(h):
        B, C, H, W = h.shape
        return h.reshape(B, C, H // 2, 2, W // 2, 2).max(axis=(3, 5))

    h = pool(jnp.maximum(conv(x, raw["conv1_w"], raw["conv1_b"]), 0.0))
    h = pool(jnp.maximum(conv(h, raw["conv2_w"], raw["conv2_b"]), 0.0))
    flat = h.reshape(h.shape[0], -1)          # torch .view(-1, 400), NCHW order
    h = jnp.maximum(flat @ raw["dense1_w"].T + raw["dense1_b"], 0.0)
    h = jnp.maximum(h @ raw["dense2_w"].T + raw["dense2_b"], 0.0)
    return h @ raw["dense3_w"].T + raw["dense3_b"]


if __name__ == "__main__":
    x = jax.random.normal(jax.random.PRNGKey(0), (2, 3, 32, 32), jnp.float32)
    raw = init_lenet_params(jax.random.PRNGKey(42))
    packed = pack_params(raw)

    logits = jax.jit(lenet_forward)(packed, x)
    jax.block_until_ready(logits)
    assert logits.shape == (2, 10)
    assert logits.dtype == jnp.float32

    ref = lenet_reference(raw, x)
    err = float(jnp.max(jnp.abs(logits - ref)))
    assert err < 5e-2, f"mismatch vs reference: max abs err = {err}"
    print("KERNEL_OK")
</pallas_src>

<mosaic_0001>
module attributes {stable_mosaic.version = 11 : i64} {
  func.func @_conv_relu_pool_kernel(%arg0: i32, %arg1: memref<256x75xf32, #tpu.memory_space<vmem>>, %arg2: memref<256x75xf32, #tpu.memory_space<vmem>>, %arg3: memref<256x75xf32, #tpu.memory_space<vmem>>, %arg4: memref<256x75xf32, #tpu.memory_space<vmem>>, %arg5: memref<75x128xf32, #tpu.memory_space<vmem>>, %arg6: memref<1x128xf32, #tpu.memory_space<vmem>>, %arg7: memref<256x128xf32, #tpu.memory_space<vmem>>) attributes {dimension_semantics = [#tpu.dimension_semantics<parallel>], iteration_bounds = array<i64: 2>, scalar_prefetch = 0 : i64, scratch_operands = 0 : i64, tpu.core_type = #tpu.core_type<tc>, window_params = [{transform_indices = @transform_0, window_bounds = array<i64: 256, 75>}, {transform_indices = @transform_1, window_bounds = array<i64: 256, 75>}, {transform_indices = @transform_2, window_bounds = array<i64: 256, 75>}, {transform_indices = @transform_3, window_bounds = array<i64: 256, 75>}, {pipeline_mode = #tpu.pipeline_mode<synchronous>, transform_indices = @transform_4, window_bounds = array<i64: 75, 128>}, {pipeline_mode = #tpu.pipeline_mode<synchronous>, transform_indices = @transform_5, window_bounds = array<i64: 1, 128>}, {transform_indices = @transform_6, window_bounds = array<i64: 256, 128>}]} {
    %c0 = arith.constant 0 : index
    %c0_0 = arith.constant 0 : index
    %0 = vector.load %arg5[%c0, %c0_0] : memref<75x128xf32, #tpu.memory_space<vmem>>, vector<75x128xf32>
    %c0_1 = arith.constant 0 : index
    %c0_2 = arith.constant 0 : index
    %1 = vector.load %arg1[%c0_1, %c0_2] : memref<256x75xf32, #tpu.memory_space<vmem>>, vector<256x75xf32>
    %cst = arith.constant dense<0.000000e+00> : vector<256x128xf32>
    %2 = tpu.matmul %1, %0, %cst {dimension_numbers = #tpu.dot_dimension_numbers<[1], [0], [0], [1], [0, 0, 1, 1], [], []>} : vector<256x75xf32>, vector<75x128xf32>, vector<256x128xf32> -> vector<256x128xf32>
    %c0_3 = arith.constant 0 : index
    %c0_4 = arith.constant 0 : index
    %3 = vector.load %arg2[%c0_3, %c0_4] : memref<256x75xf32, #tpu.memory_space<vmem>>, vector<256x75xf32>
    %cst_5 = arith.constant dense<0.000000e+00> : vector<256x128xf32>
    %4 = tpu.matmul %3, %0, %cst_5 {dimension_numbers = #tpu.dot_dimension_numbers<[1], [0], [0], [1], [0, 0, 1, 1], [], []>} : vector<256x75xf32>, vector<75x128xf32>, vector<256x128xf32> -> vector<256x128xf32>
    %5 = arith.maximumf %2, %4 : vector<256x128xf32>
    %c0_6 = arith.constant 0 : index
    %c0_7 = arith.constant 0 : index
    %6 = vector.load %arg3[%c0_6, %c0_7] : memref<256x75xf32, #tpu.memory_space<vmem>>, vector<256x75xf32>
    %cst_8 = arith.constant dense<0.000000e+00> : vector<256x128xf32>
    %7 = tpu.matmul %6, %0, %cst_8 {dimension_numbers = #tpu.dot_dimension_numbers<[1], [0], [0], [1], [0, 0, 1, 1], [], []>} : vector<256x75xf32>, vector<75x128xf32>, vector<256x128xf32> -> vector<256x128xf32>
    %8 = arith.maximumf %5, %7 : vector<256x128xf32>
    %c0_9 = arith.constant 0 : index
    %c0_10 = arith.constant 0 : index
    %9 = vector.load %arg4[%c0_9, %c0_10] : memref<256x75xf32, #tpu.memory_space<vmem>>, vector<256x75xf32>
    %cst_11 = arith.constant dense<0.000000e+00> : vector<256x128xf32>
    %10 = tpu.matmul %9, %0, %cst_11 {dimension_numbers = #tpu.dot_dimension_numbers<[1], [0], [0], [1], [0, 0, 1, 1], [], []>} : vector<256x75xf32>, vector<75x128xf32>, vector<256x128xf32> -> vector<256x128xf32>
    %11 = arith.maximumf %8, %10 : vector<256x128xf32>
    %c0_12 = arith.constant 0 : index
    %c0_13 = arith.constant 0 : index
    %12 = vector.load %arg6[%c0_12, %c0_13] : memref<1x128xf32, #tpu.memory_space<vmem>>, vector<1x128xf32>
    %13 = vector.broadcast %12 : vector<1x128xf32> to vector<256x128xf32>
    %14 = arith.addf %11, %13 : vector<256x128xf32>
    %cst_14 = arith.constant 0.000000e+00 : f32
    %15 = vector.broadcast %cst_14 : f32 to vector<256x128xf32>
    %16 = arith.maximumf %14, %15 : vector<256x128xf32>
    %c0_15 = arith.constant 0 : index
    %c0_16 = arith.constant 0 : index
    %17 = vector.load %arg7[%c0_15, %c0_16] : memref<256x128xf32, #tpu.memory_space<vmem>>, vector<256x128xf32>
    tpu.vector_store %arg7[%c0_15, %c0_16], %16 {strides = array<i32>} : memref<256x128xf32, #tpu.memory_space<vmem>>, vector<256x128xf32>,
    return
  }
  func.func @transform_0(%arg0: i32) -> (i32, i32) {
    %c0_i32 = arith.constant 0 : i32
    %c0_i32_0 = arith.constant 0 : i32
    return %arg0, %c0_i32 : i32, i32
  }
  func.func @transform_1(%arg0: i32) -> (i32, i32) {
    %c0_i32 = arith.constant 0 : i32
    %c0_i32_0 = arith.constant 0 : i32
    return %arg0, %c0_i32 : i32, i32
  }
  func.func @transform_2(%arg0: i32) -> (i32, i32) {
    %c0_i32 = arith.constant 0 : i32
    %c0_i32_0 = arith.constant 0 : i32
    return %arg0, %c0_i32 : i32, i32
  }
  func.func @transform_3(%arg0: i32) -> (i32, i32) {
    %c0_i32 = arith.constant 0 : i32
    %c0_i32_0 = arith.constant 0 : i32
    return %arg0, %c0_i32 : i32, i32
  }
  func.func @transform_4(%arg0: i32) -> (i32, i32) {
    %c0_i32 = arith.constant 0 : i32
    %c0_i32_0 = arith.constant 0 : i32
    %c0_i32_1 = arith.constant 0 : i32
    return %c0_i32, %c0_i32_0 : i32, i32
  }
  func.func @transform_5(%arg0: i32) -> (i32, i32) {
    %c0_i32 = arith.constant 0 : i32
    %c0_i32_0 = arith.constant 0 : i32
    %c0_i32_1 = arith.constant 0 : i32
    return %c0_i32, %c0_i32_0 : i32, i32
  }
  func.func @transform_6(%arg0: i32) -> (i32, i32) {
    %c0_i32 = arith.constant 0 : i32
    %c0_i32_0 = arith.constant 0 : i32
    return %arg0, %c0_i32 : i32, i32
  }
}

module attributes {stable_mosaic.version = 11 : i64} {
  func.func @_conv_relu_pool_kernel(%arg0: memref<50x150xf32, #tpu.memory_space<vmem>>, %arg1: memref<50x150xf32, #tpu.memory_space<vmem>>, %arg2: memref<50x150xf32, #tpu.memory_space<vmem>>, %arg3: memref<50x150xf32, #tpu.memory_space<vmem>>, %arg4: memref<150x128xf32, #tpu.memory_space<vmem>>, %arg5: memref<1x128xf32, #tpu.memory_space<vmem>>, %arg6: memref<50x128xf32, #tpu.memory_space<vmem>>) attributes {dimension_semantics = [], scalar_prefetch = 0 : i64, scratch_operands = 0 : i64, tpu.core_type = #tpu.core_type<tc>} {
    %c0 = arith.constant 0 : index
    %c0_0 = arith.constant 0 : index
    %0 = vector.load %arg4[%c0, %c0_0] : memref<150x128xf32, #tpu.memory_space<vmem>>, vector<150x128xf32>
    %c0_1 = arith.constant 0 : index
    %c0_2 = arith.constant 0 : index
    %1 = vector.load %arg0[%c0_1, %c0_2] : memref<50x150xf32, #tpu.memory_space<vmem>>, vector<50x150xf32>
    %cst = arith.constant dense<0.000000e+00> : vector<50x128xf32>
    %2 = tpu.matmul %1, %0, %cst {dimension_numbers = #tpu.dot_dimension_numbers<[1], [0], [0], [1], [0, 0, 1, 1], [], []>} : vector<50x150xf32>, vector<150x128xf32>, vector<50x128xf32> -> vector<50x128xf32>
    %c0_3 = arith.constant 0 : index
    %c0_4 = arith.constant 0 : index
    %3 = vector.load %arg1[%c0_3, %c0_4] : memref<50x150xf32, #tpu.memory_space<vmem>>, vector<50x150xf32>
    %cst_5 = arith.constant dense<0.000000e+00> : vector<50x128xf32>
    %4 = tpu.matmul %3, %0, %cst_5 {dimension_numbers = #tpu.dot_dimension_numbers<[1], [0], [0], [1], [0, 0, 1, 1], [], []>} : vector<50x150xf32>, vector<150x128xf32>, vector<50x128xf32> -> vector<50x128xf32>
    %5 = arith.maximumf %2, %4 : vector<50x128xf32>
    %c0_6 = arith.constant 0 : index
    %c0_7 = arith.constant 0 : index
    %6 = vector.load %arg2[%c0_6, %c0_7] : memref<50x150xf32, #tpu.memory_space<vmem>>, vector<50x150xf32>
    %cst_8 = arith.constant dense<0.000000e+00> : vector<50x128xf32>
    %7 = tpu.matmul %6, %0, %cst_8 {dimension_numbers = #tpu.dot_dimension_numbers<[1], [0], [0], [1], [0, 0, 1, 1], [], []>} : vector<50x150xf32>, vector<150x128xf32>, vector<50x128xf32> -> vector<50x128xf32>
    %8 = arith.maximumf %5, %7 : vector<50x128xf32>
    %c0_9 = arith.constant 0 : index
    %c0_10 = arith.constant 0 : index
    %9 = vector.load %arg3[%c0_9, %c0_10] : memref<50x150xf32, #tpu.memory_space<vmem>>, vector<50x150xf32>
    %cst_11 = arith.constant dense<0.000000e+00> : vector<50x128xf32>
    %10 = tpu.matmul %9, %0, %cst_11 {dimension_numbers = #tpu.dot_dimension_numbers<[1], [0], [0], [1], [0, 0, 1, 1], [], []>} : vector<50x150xf32>, vector<150x128xf32>, vector<50x128xf32> -> vector<50x128xf32>
    %11 = arith.maximumf %8, %10 : vector<50x128xf32>
    %c0_12 = arith.constant 0 : index
    %c0_13 = arith.constant 0 : index
    %12 = vector.load %arg5[%c0_12, %c0_13] : memref<1x128xf32, #tpu.memory_space<vmem>>, vector<1x128xf32>
    %13 = vector.broadcast %12 : vector<1x128xf32> to vector<50x128xf32>
    %14 = arith.addf %11, %13 : vector<50x128xf32>
    %cst_14 = arith.constant 0.000000e+00 : f32
    %15 = vector.broadcast %cst_14 : f32 to vector<50x128xf32>
    %16 = arith.maximumf %14, %15 : vector<50x128xf32>
    %c0_15 = arith.constant 0 : index
    %c0_16 = arith.constant 0 : index
    %17 = vector.load %arg6[%c0_15, %c0_16] : memref<50x128xf32, #tpu.memory_space<vmem>>, vector<50x128xf32>
    tpu.vector_store %arg6[%c0_15, %c0_16], %16 {strides = array<i32>} : memref<50x128xf32, #tpu.memory_space<vmem>>, vector<50x128xf32>,
    return
  }
}

module attributes {stable_mosaic.version = 11 : i64} {
  func.func @_dense_stack_kernel(%arg0: memref<2x400xf32, #tpu.memory_space<vmem>>, %arg1: memref<400x128xf32, #tpu.memory_space<vmem>>, %arg2: memref<1x128xf32, #tpu.memory_space<vmem>>, %arg3: memref<128x128xf32, #tpu.memory_space<vmem>>, %arg4: memref<1x128xf32, #tpu.memory_space<vmem>>, %arg5: memref<128x128xf32, #tpu.memory_space<vmem>>, %arg6: memref<1x128xf32, #tpu.memory_space<vmem>>, %arg7: memref<2x128xf32, #tpu.memory_space<vmem>>) attributes {dimension_semantics = [], scalar_prefetch = 0 : i64, scratch_operands = 0 : i64, tpu.core_type = #tpu.core_type<tc>} {
    %c0 = arith.constant 0 : index
    %c0_0 = arith.constant 0 : index
    %0 = vector.load %arg0[%c0, %c0_0] : memref<2x400xf32, #tpu.memory_space<vmem>>, vector<2x400xf32>
    %c0_1 = arith.constant 0 : index
    %c0_2 = arith.constant 0 : index
    %1 = vector.load %arg1[%c0_1, %c0_2] : memref<400x128xf32, #tpu.memory_space<vmem>>, vector<400x128xf32>
    %cst = arith.constant dense<0.000000e+00> : vector<2x128xf32>
    %2 = tpu.matmul %0, %1, %cst {dimension_numbers = #tpu.dot_dimension_numbers<[1], [0], [0], [1], [0, 0, 1, 1], [], []>} : vector<2x400xf32>, vector<400x128xf32>, vector<2x128xf32> -> vector<2x128xf32>
    %c0_3 = arith.constant 0 : index
    %c0_4 = arith.constant 0 : index
    %3 = vector.load %arg2[%c0_3, %c0_4] : memref<1x128xf32, #tpu.memory_space<vmem>>, vector<1x128xf32>
    %4 = vector.broadcast %3 : vector<1x128xf32> to vector<2x128xf32>
    %5 = arith.addf %2, %4 : vector<2x128xf32>
    %cst_5 = arith.constant 0.000000e+00 : f32
    %6 = vector.broadcast %cst_5 : f32 to vector<2x128xf32>
    %7 = arith.maximumf %5, %6 : vector<2x128xf32>
    %c0_6 = arith.constant 0 : index
    %c0_7 = arith.constant 0 : index
    %8 = vector.load %arg3[%c0_6, %c0_7] : memref<128x128xf32, #tpu.memory_space<vmem>>, vector<128x128xf32>
    %cst_8 = arith.constant dense<0.000000e+00> : vector<2x128xf32>
    %9 = tpu.matmul %7, %8, %cst_8 {dimension_numbers = #tpu.dot_dimension_numbers<[1], [0], [0], [1], [0, 0, 1, 1], [], []>} : vector<2x128xf32>, vector<128x128xf32>, vector<2x128xf32> -> vector<2x128xf32>
    %c0_9 = arith.constant 0 : index
    %c0_10 = arith.constant 0 : index
    %10 = vector.load %arg4[%c0_9, %c0_10] : memref<1x128xf32, #tpu.memory_space<vmem>>, vector<1x128xf32>
    %11 = vector.broadcast %10 : vector<1x128xf32> to vector<2x128xf32>
    %12 = arith.addf %9, %11 : vector<2x128xf32>
    %cst_11 = arith.constant 0.000000e+00 : f32
    %13 = vector.broadcast %cst_11 : f32 to vector<2x128xf32>
    %14 = arith.maximumf %12, %13 : vector<2x128xf32>
    %c0_12 = arith.constant 0 : index
    %c0_13 = arith.constant 0 : index
    %15 = vector.load %arg5[%c0_12, %c0_13] : memref<128x128xf32, #tpu.memory_space<vmem>>, vector<128x128xf32>
    %cst_14 = arith.constant dense<0.000000e+00> : vector<2x128xf32>
    %16 = tpu.matmul %14, %15, %cst_14 {dimension_numbers = #tpu.dot_dimension_numbers<[1], [0], [0], [1], [0, 0, 1, 1], [], []>} : vector<2x128xf32>, vector<128x128xf32>, vector<2x128xf32> -> vector<2x128xf32>
    %c0_15 = arith.constant 0 : index
    %c0_16 = arith.constant 0 : index
    %17 = vector.load %arg6[%c0_15, %c0_16] : memref<1x128xf32, #tpu.memory_space<vmem>>, vector<1x128xf32>
    %18 = vector.broadcast %17 : vector<1x128xf32> to vector<2x128xf32>
    %19 = arith.addf %16, %18 : vector<2x128xf32>
    %c0_17 = arith.constant 0 : index
    %c0_18 = arith.constant 0 : index
    %20 = vector.load %arg7[%c0_17, %c0_18] : memref<2x128xf32, #tpu.memory_space<vmem>>, vector<2x128xf32>
    tpu.vector_store %arg7[%c0_17, %c0_18], %19 {strides = array<i32>} : memref<2x128xf32, #tpu.memory_space<vmem>>, vector<2x128xf32>,
    return
  }
}

</mosaic_0001>

<llo_original>
// kernel: lenet_forward.3
$region0: #{lenet_forward.3}
  #allocation0 [shape = 'u32[]', space=smem, size = 0x4, offset = 0x4, fixed_abs, tag = 'smem constant byte address 0x4 - core index']
  #allocation1 [shape = 'u32[144,128]{1,0:T(1,128)}', space=vmem, size = 0x12000, scoped, tag = 'internal scratch']
  %s0 = inlined_call_operand.vmem [shape: f32[512,75], index: 0, kind: input, shape index: {}]
  %s1 = inlined_call_operand.vmem [shape: f32[512,75], index: 1, kind: input, shape index: {}]
  %s2 = inlined_call_operand.vmem [shape: f32[512,75], index: 2, kind: input, shape index: {}]
  %s3 = inlined_call_operand.vmem [shape: f32[512,75], index: 3, kind: input, shape index: {}]
  %s4 = inlined_call_operand.vmem [shape: f32[75,128], index: 4, kind: input, shape index: {}]
  %s5 = inlined_call_operand.vmem [shape: f32[1,128], index: 5, kind: input, shape index: {}]
  %s6 = inlined_call_operand.vmem [shape: f32[512,128], index: 6, kind: output, shape index: {}]
  %s7 = sld [smem:[#allocation0]]
  $region57: #{lenet_forward.3} parent=0
    _
  %s9 = ssub.s32 1, %s7
  %s10 = scalar_select 0, %s9, %s7
  loop: start=0, step=1, limit=4
  $region2: #{lenet_forward.3} parent=0 // loop_pre_header
    _
  $region3: #{lenet_forward.3} parent=0 // loop_header
    %s12 = sphi 0, %s16
    %p13 = scmp.ge.s32.totalorder %s12, 4
    %s22 = sphi 0, %s24
    %s25 = sphi 0, %s22
    %s26 = sphi 0, %s25
    %s42 = sphi 0, %s26
    %s48 = sphi 0, %s50
    %s51 = sphi 0, %s48
    %s52 = sphi 0, %s51
    %s68 = sphi 0, %s52
    %s74 = sphi 0, %s76
    %s77 = sphi 0, %s74
    %s78 = sphi 0, %s77
    %s94 = sphi 0, %s78
    %s100 = sphi 0, %s102
    %s103 = sphi 0, %s100
    %s104 = sphi 0, %s103
    %s120 = sphi 0, %s104
    %s124 = sphi 0, %s124
    %s126 = sphi 0, %s124
    %s127 = sphi 0, %s126
    %s141 = sphi 0, %s127
    %s145 = sphi 0, %s145
    %s147 = sphi 0, %s145
    %s148 = sphi 0, %s147
    %s162 = sphi 0, %s148
    %s168 = sphi 0, %s170
    %s171 = sphi 0, %s168
    %s172 = sphi 0, %s171
    %s188 = sphi 0, %s172
  $region4: #{lenet_forward.3} parent=0 // loop_header_branch
    %15 = sbr.rel (%p13) target = $region8
  $region5: #{lenet_forward.3} parent=0 // loop_body
    %s17 = ssub.s32 %s12, 1
    %s18 = ssub.s32 %s12, 2
    %s19 = sadd.s32 %s12, 1
    %s20 = ssub.s32 %s12, %s19
    %p21 = scmp.eq.s32.totalorder %s20, 0
    %s23 = sadd.s32 %s22, 1
    %s24 = scalar_select %p21, %s22, %s23
    %p27 = pneg %p21
    %p28 = scmp.eq.s32.totalorder %s12, 1
    %p29 = por %p27, %p28
    %p30 = scmp.ne.s32.totalorder %s22, %s25
    %p31 = scmp.eq.s32.totalorder %s12, 0
    %p32 = por %p30, %p31
    %p33 = scmp.ne.s32.totalorder %s22, %s25
    %p34 = scmp.eq.s32.totalorder %s17, 1
    %p35 = por %p33, %p34
    %p36 = scmp.ne.s32.totalorder %s25, %s26
    %p37 = scmp.eq.s32.totalorder %s17, 0
    %p38 = por %p36, %p37
    %p39 = scmp.ne.s32.totalorder %s25, %s26
    %p40 = scmp.eq.s32.totalorder %s18, 1
    %p41 = por %p39, %p40
    %p43 = scmp.ne.s32.totalorder %s26, %s42
    %p44 = scmp.eq.s32.totalorder %s18, 0
    %p45 = por %p43, %p44
    %s46 = ssub.s32 %s12, %s19
    %p47 = scmp.eq.s32.totalorder %s46, 0
    %s49 = sadd.s32 %s48, 1
    %s50 = scalar_select %p47, %s48, %s49
    %p53 = pneg %p47
    %p54 = scmp.eq.s32.totalorder %s12, 1
    %p55 = por %p53, %p54
    %p56 = scmp.ne.s32.totalorder %s48, %s51
    %p57 = scmp.eq.s32.totalorder %s12, 0
    %p58 = por %p56, %p57
    %p59 = scmp.ne.s32.totalorder %s48, %s51
    %p60 = scmp.eq.s32.totalorder %s17, 1
    %p61 = por %p59, %p60
    %p62 = scmp.ne.s32.totalorder %s51, %s52
    %p63 = scmp.eq.s32.totalorder %s17, 0
    %p64 = por %p62, %p63
    %p65 = scmp.ne.s32.totalorder %s51, %s52
    %p66 = scmp.eq.s32.totalorder %s18, 1
    %p67 = por %p65, %p66
    %p69 = scmp.ne.s32.totalorder %s52, %s68
    %p70 = scmp.eq.s32.totalorder %s18, 0
    %p71 = por %p69, %p70
    %s72 = ssub.s32 %s12, %s19
    %p73 = scmp.eq.s32.totalorder %s72, 0
    %s75 = sadd.s32 %s74, 1
    %s76 = scalar_select %p73, %s74, %s75
    %p79 = pneg %p73
    %p80 = scmp.eq.s32.totalorder %s12, 1
    %p81 = por %p79, %p80
    %p82 = scmp.ne.s32.totalorder %s74, %s77
    %p83 = scmp.eq.s32.totalorder %s12, 0
    %p84 = por %p82, %p83
    %p85 = scmp.ne.s32.totalorder %s74, %s77
    %p86 = scmp.eq.s32.totalorder %s17, 1
    %p87 = por %p85, %p86
    %p88 = scmp.ne.s32.totalorder %s77, %s78
    %p89 = scmp.eq.s32.totalorder %s17, 0
    %p90 = por %p88, %p89
    %p91 = scmp.ne.s32.totalorder %s77, %s78
    %p92 = scmp.eq.s32.totalorder %s18, 1
    %p93 = por %p91, %p92
    %p95 = scmp.ne.s32.totalorder %s78, %s94
    %p96 = scmp.eq.s32.totalorder %s18, 0
    %p97 = por %p95, %p96
    %s98 = ssub.s32 %s12, %s19
    %p99 = scmp.eq.s32.totalorder %s98, 0
    %s101 = sadd.s32 %s100, 1
    %s102 = scalar_select %p99, %s100, %s101
    %p105 = pneg %p99
    %p106 = scmp.eq.s32.totalorder %s12, 1
    %p107 = por %p105, %p106
    %p108 = scmp.ne.s32.totalorder %s100, %s103
    %p109 = scmp.eq.s32.totalorder %s12, 0
    %p110 = por %p108, %p109
    %p111 = scmp.ne.s32.totalorder %s100, %s103
    %p112 = scmp.eq.s32.totalorder %s17, 1
    %p113 = por %p111, %p112
    %p114 = scmp.ne.s32.totalorder %s103, %s104
    %p115 = scmp.eq.s32.totalorder %s17, 0
    %p116 = por %p114, %p115
    %p117 = scmp.ne.s32.totalorder %s103, %s104
    %p118 = scmp.eq.s32.totalorder %s18, 1
    %p119 = por %p117, %p118
    %p121 = scmp.ne.s32.totalorder %s104, %s120
    %p122 = scmp.eq.s32.totalorder %s18, 0
    %p123 = por %p121, %p122
    %s125 = sadd.s32 %s124, 1
    %p128 = scmp.eq.s32.totalorder %s12, 1
    %p129 = scmp.ne.s32.totalorder %s124, %s126
    %p130 = scmp.eq.s32.totalorder %s12, 0
    %p131 = por %p129, %p130
    %p132 = scmp.ne.s32.totalorder %s124, %s126
    %p133 = scmp.eq.s32.totalorder %s17, 1
    %p134 = por %p132, %p133
    %p135 = scmp.ne.s32.totalorder %s126, %s127
    %p136 = scmp.eq.s32.totalorder %s17, 0
    %p137 = por %p135, %p136
    %p138 = scmp.ne.s32.totalorder %s126, %s127
    %p139 = scmp.eq.s32.totalorder %s18, 1
    %p140 = por %p138, %p139
    %p142 = scmp.ne.s32.totalorder %s127, %s141
    %p143 = scmp.eq.s32.totalorder %s18, 0
    %p144 = por %p142, %p143
    %s146 = sadd.s32 %s145, 1
    %p149 = scmp.eq.s32.totalorder %s12, 1
    %p150 = scmp.ne.s32.totalorder %s145, %s147
    %p151 = scmp.eq.s32.totalorder %s12, 0
    %p152 = por %p150, %p151
    %p153 = scmp.ne.s32.totalorder %s145, %s147
    %p154 = scmp.eq.s32.totalorder %s17, 1
    %p155 = por %p153, %p154
    %p156 = scmp.ne.s32.totalorder %s147, %s148
    %p157 = scmp.eq.s32.totalorder %s17, 0
    %p158 = por %p156, %p157
    %p159 = scmp.ne.s32.totalorder %s147, %s148
    %p160 = scmp.eq.s32.totalorder %s18, 1
    %p161 = por %p159, %p160
    %p163 = scmp.ne.s32.totalorder %s148, %s162
    %p164 = scmp.eq.s32.totalorder %s18, 0
    %p165 = por %p163, %p164
    %s166 = ssub.s32 %s12, %s19
    %p167 = scmp.eq.s32.totalorder %s166, 0
    %s169 = sadd.s32 %s168, 1
    %s170 = scalar_select %p167, %s168, %s169
    %p173 = pneg %p167
    %p174 = scmp.eq.s32.totalorder %s12, 1
    %p175 = por %p173, %p174
    %p176 = scmp.ne.s32.totalorder %s168, %s171
    %p177 = scmp.eq.s32.totalorder %s12, 0
    %p178 = por %p176, %p177
    %p179 = scmp.ne.s32.totalorder %s168, %s171
    %p180 = scmp.eq.s32.totalorder %s17, 1
    %p181 = por %p179, %p180
    %p182 = scmp.ne.s32.totalorder %s171, %s172
    %p183 = scmp.eq.s32.totalorder %s17, 0
    %p184 = por %p182, %p183
    %p185 = scmp.ne.s32.totalorder %s171, %s172
    %p186 = scmp.eq.s32.totalorder %s18, 1
    %p187 = por %p185, %p186
    %p189 = scmp.ne.s32.totalorder %s172, %s188
    %p190 = scmp.eq.s32.totalorder %s18, 0
    %p191 = por %p189, %p190
    %p192 = scmp.le.s32.totalorder 1, %s12
    %p193 = scmp.lt.s32.totalorder %s12, 3
    %p194 = pnand %p192, %p193
    %p195 = pneg %p194
    // Predicated region
    $region9: #{lenet_forward.3} parent=5 // pred_check
      _
    $region10: #{lenet_forward.3} parent=5 // pred_check_branch
      %197 = sbr.rel (%p194) target = $region12
    $region11: #{lenet_forward.3} parent=5 // pred_region
      %s198 = ssub.s32 %s12, 1
      // Predicated region
      $region13: #{lenet_forward.3} parent=11 // pred_check
        %p199 = pneg %p137
      $region14: #{lenet_forward.3} parent=11 // pred_check_branch
        %201 = sbr.rel (%p199) target = $region16
      $region15: #{lenet_forward.3} parent=11 // pred_region
        _
      $region16: #{lenet_forward.3} parent=11 // pred_fallthru
        _
      // Predicated region
      $region17: #{lenet_forward.3} parent=11 // pred_check
        %p202 = pneg %p158
      $region18: #{lenet_forward.3} parent=11 // pred_check_branch
        %204 = sbr.rel (%p202) target = $region20
      $region19: #{lenet_forward.3} parent=11 // pred_region
        _
      $region20: #{lenet_forward.3} parent=11 // pred_fallthru
        _
    $region12: #{lenet_forward.3} parent=5 // pred_fallthru
      _
    %p205 = scmp.lt.s32.totalorder %s12, 2
    // Predicated region
    $region21: #{lenet_forward.3} parent=5 // pred_check
      %p206 = pneg %p205
    $region22: #{lenet_forward.3} parent=5 // pred_check_branch
      %208 = sbr.rel (%p206) target = $region24
    $region23: #{lenet_forward.3} parent=5 // pred_region
      // Predicated region
      $region25: #{lenet_forward.3} parent=23 // pred_check
        %p209 = pneg %p32
      $region26: #{lenet_forward.3} parent=23 // pred_check_branch
        %211 = sbr.rel (%p209) target = $region28
      $region27: #{lenet_forward.3} parent=23 // pred_region
        %s212 = smul.u32 32, %s12
        %p213 = scmp.lt.s32.totalorder %s212, 63
        %s214 = scalar_select %p213, %s212, 63
        %s215 = smul.addr %s214, 8
        %s216 = scalar_lea.vmem %s0, %s215
        %s217 = smul.u32 32, %s12
      $region28: #{lenet_forward.3} parent=23 // pred_fallthru
        _
      // Predicated region
      $region29: #{lenet_forward.3} parent=23 // pred_check
        %p218 = pneg %p58
      $region30: #{lenet_forward.3} parent=23 // pred_check_branch
        %220 = sbr.rel (%p218) target = $region32
      $region31: #{lenet_forward.3} parent=23 // pred_region
        %s221 = smul.u32 32, %s12
        %p222 = scmp.lt.s32.totalorder %s221, 63
        %s223 = scalar_select %p222, %s221, 63
        %s224 = smul.addr %s223, 8
        %s225 = scalar_lea.vmem %s1, %s224
        %s226 = smul.u32 32, %s12
      $region32: #{lenet_forward.3} parent=23 // pred_fallthru
        _
      // Predicated region
      $region33: #{lenet_forward.3} parent=23 // pred_check
        %p227 = pneg %p84
      $region34: #{lenet_forward.3} parent=23 // pred_check_branch
        %229 = sbr.rel (%p227) target = $region36
      $region35: #{lenet_forward.3} parent=23 // pred_region
        %s230 = smul.u32 32, %s12
        %p231 = scmp.lt.s32.totalorder %s230, 63
        %s232 = scalar_select %p231, %s230, 63
        %s233 = smul.addr %s232, 8
        %s234 = scalar_lea.vmem %s2, %s233
        %s235 = smul.u32 32, %s12
      $region36: #{lenet_forward.3} parent=23 // pred_fallthru
        _
      // Predicated region
      $region37: #{lenet_forward.3} parent=23 // pred_check
        %p236 = pneg %p110
      $region38: #{lenet_forward.3} parent=23 // pred_check_branch
        %238 = sbr.rel (%p236) target = $region40
      $region39: #{lenet_forward.3} parent=23 // pred_region
        %s239 = smul.u32 32, %s12
        %p240 = scmp.lt.s32.totalorder %s239, 63
        %s241 = scalar_select %p240, %s239, 63
        %s242 = smul.addr %s241, 8
        %s243 = scalar_lea.vmem %s3, %s242
        %s244 = smul.u32 32, %s12
      $region40: #{lenet_forward.3} parent=23 // pred_fallthru
        _
    $region24: #{lenet_forward.3} parent=5 // pred_fallthru
      _
    %p245 = scmp.le.s32.totalorder 1, %s12
    %p246 = scmp.lt.s32.totalorder %s12, 3
    %p247 = pnand %p245, %p246
    %p248 = pneg %p247
    // Predicated region
    $region41: #{lenet_forward.3} parent=5 // pred_check
      _
    $region42: #{lenet_forward.3} parent=5 // pred_check_branch
      %250 = sbr.rel (%p247) target = $region44
    $region43: #{lenet_forward.3} parent=5 // pred_region
      %s251 = ssub.s32 %s12, 1
      %s252 = smul.u32 32, %s17
      %p253 = scmp.lt.s32.totalorder %s252, 63
      %s254 = scalar_select %p253, %s252, 63
      %s255 = smul.addr %s254, 8
      %s256 = scalar_lea.vmem %s0, %s255
      %p257 = pneg %p38
      %p258 = pneg %p35
      %s259 = smul.u32 32, %s17
      %p260 = scmp.lt.s32.totalorder %s259, 63
      %s261 = scalar_select %p260, %s259, 63
      %s262 = smul.addr %s261, 8
      %s263 = scalar_lea.vmem %s1, %s262
      %p264 = pneg %p64
      %p265 = pneg %p61
      %s266 = smul.u32 32, %s17
      %p267 = scmp.lt.s32.totalorder %s266, 63
      %s268 = scalar_select %p267, %s266, 63
      %s269 = smul.addr %s268, 8
      %s270 = scalar_lea.vmem %s2, %s269
      %p271 = pneg %p90
      %p272 = pneg %p87
      %s273 = smul.u32 32, %s17
      %p274 = scmp.lt.s32.totalorder %s273, 63
      %s275 = scalar_select %p274, %s273, 63
      %s276 = smul.addr %s275, 8
      %s277 = scalar_lea.vmem %s3, %s276
      %p278 = pneg %p116
      %p279 = pneg %p113
      %p280 = pneg %p137
      %p281 = pneg %p134
      %p282 = pneg %p158
      %p283 = pneg %p155
      %p284 = pneg %p184
      %p285 = pneg %p181
      %s286 = smul.u32 32, %s17
      %p287 = scmp.lt.s32.totalorder %s286, 63
      %s288 = scalar_select %p287, %s286, 63
      %s289 = smul.addr %s288, 8
      %s290 = scalar_lea.vmem %s6, %s289
      %s291 = smul.u32 32, %s17
      %p292 = scmp.lt.s32.totalorder %s291, 63
      %s293 = scalar_select %p292, %s291, 63
      %s294 = smul.addr %s293, 8
      %s295 = scalar_lea.vmem %s0, %s294
      %s296 = smul.u32 32, %s17
      %s297 = smul.u32 32, %s17
      %p298 = scmp.lt.s32.totalorder %s297, 63
      %s299 = scalar_select %p298, %s297, 63
      %s300 = smul.addr %s299, 8
      %s301 = scalar_lea.vmem %s1, %s300
      %s302 = smul.u32 32, %s17
      %s303 = smul.u32 32, %s17
      %p304 = scmp.lt.s32.totalorder %s303, 63
      %s305 = scalar_select %p304, %s303, 63
      %s306 = smul.addr %s305, 8
      %s307 = scalar_lea.vmem %s2, %s306
      %s308 = smul.u32 32, %s17
      %s309 = smul.u32 32, %s17
      %p310 = scmp.lt.s32.totalorder %s309, 63
      %s311 = scalar_select %p310, %s309, 63
      %s312 = smul.addr %s311, 8
      %s313 = scalar_lea.vmem %s3, %s312
      %s314 = smul.u32 32, %s17
      %s315 = smul.u32 32, %s17
      %p316 = scmp.lt.s32.totalorder %s315, 63
      %s317 = scalar_select %p316, %s315, 63
      %s318 = smul.addr %s317, 8
      %s319 = scalar_lea.vmem %s6, %s318
      %s320 = smul.u32 32, %s17
      %v321 = vld [vmem:[%s4] sm:$0xff]
      %v322 = vld [vmem:[%s4 + $0x8] sm:$0xff]
      %v323 = vld [vmem:[%s4 + $0x10] sm:$0xff]
      %v324 = vld [vmem:[%s4 + $0x18] sm:$0xff]
      %v325 = vld [vmem:[%s4 + $0x20] sm:$0xff]
      %v326 = vld [vmem:[%s4 + $0x28] sm:$0xff]
      %v327 = vld [vmem:[%s4 + $0x30] sm:$0xff]
      %v328 = vld [vmem:[%s4 + $0x38] sm:$0xff]
      %v329 = vld [vmem:[%s4 + $0x40] sm:$0xff]
      %v330 = vld [vmem:[%s4 + $0x48] sm:$0x7]
      %v331 = vld [vmem:[%s295] sm:$0xff]
      %v332 = vld [vmem:[%s295 + $0x8] sm:$0xff]
      %v333 = vld [vmem:[%s295 + $0x10] sm:$0xff]
      %v334 = vld [vmem:[%s295 + $0x18] sm:$0xff]
      %v335 = vld [vmem:[%s295 + $0x20] sm:$0xff]
      %v336 = vld [vmem:[%s295 + $0x28] sm:$0xff]
      %v337 = vld [vmem:[%s295 + $0x30] sm:$0xff]
      %v338 = vld [vmem:[%s295 + $0x38] sm:$0xff]
      %v339 = vld [vmem:[%s295 + $0x40] sm:$0xff]
      %v340 = vld [vmem:[%s295 + $0x48] sm:$0xff]
      %v341 = vld [vmem:[%s295 + $0x50] sm:$0xff]
      %v342 = vld [vmem:[%s295 + $0x58] sm:$0xff]
      %v343 = vld [vmem:[%s295 + $0x60] sm:$0xff]
      %v344 = vld [vmem:[%s295 + $0x68] sm:$0xff]
      %v345 = vld [vmem:[%s295 + $0x70] sm:$0xff]
      %v346 = vld [vmem:[%s295 + $0x78] sm:$0xff]
      %v347 = vld [vmem:[%s295 + $0x80] sm:$0xff]
      %v348 = vld [vmem:[%s295 + $0x88] sm:$0xff]
      %v349 = vld [vmem:[%s295 + $0x90] sm:$0xff]
      %v350 = vld [vmem:[%s295 + $0x98] sm:$0xff]
      %v351 = vld [vmem:[%s295 + $0xa0] sm:$0xff]
      %v352 = vld [vmem:[%s295 + $0xa8] sm:$0xff]
      %v353 = vld [vmem:[%s295 + $0xb0] sm:$0xff]
      %v354 = vld [vmem:[%s295 + $0xb8] sm:$0xff]
      %v355 = vld [vmem:[%s295 + $0xc0] sm:$0xff]
      %v356 = vld [vmem:[%s295 + $0xc8] sm:$0xff]
      %v357 = vld [vmem:[%s295 + $0xd0] sm:$0xff]
      %v358 = vld [vmem:[%s295 + $0xd8] sm:$0xff]
      %v359 = vld [vmem:[%s295 + $0xe0] sm:$0xff]
      %v360 = vld [vmem:[%s295 + $0xe8] sm:$0xff]
      %v361 = vld [vmem:[%s295 + $0xf0] sm:$0xff]
      %v362 = vld [vmem:[%s295 + $0xf8] sm:$0xff]
      %vm363 = vcmask 613376
      %v365 = vsel %vm363, %v331, 0
      %v368 = vsel %vm363, %v332, 0
      %v371 = vsel %vm363, %v333, 0
      %v374 = vsel %vm363, %v334, 0
      %v377 = vsel %vm363, %v335, 0
      %v380 = vsel %vm363, %v336, 0
      %v383 = vsel %vm363, %v337, 0
      %v386 = vsel %vm363, %v338, 0
      %v389 = vsel %vm363, %v339, 0
      %v392 = vsel %vm363, %v340, 0
      %v395 = vsel %vm363, %v341, 0
      %v398 = vsel %vm363, %v342, 0
      %v401 = vsel %vm363, %v343, 0
      %v404 = vsel %vm363, %v344, 0
      %v407 = vsel %vm363, %v345, 0
      %v410 = vsel %vm363, %v346, 0
      %v413 = vsel %vm363, %v347, 0
      %v416 = vsel %vm363, %v348, 0
      %v419 = vsel %vm363, %v349, 0
      %v422 = vsel %vm363, %v350, 0
      %v425 = vsel %vm363, %v351, 0
      %v428 = vsel %vm363, %v352, 0
      %v431 = vsel %vm363, %v353, 0
      %v434 = vsel %vm363, %v354, 0
      %v437 = vsel %vm363, %v355, 0
      %v440 = vsel %vm363, %v356, 0
      %v443 = vsel %vm363, %v357, 0
      %v446 = vsel %vm363, %v358, 0
      %v449 = vsel %vm363, %v359, 0
      %v452 = vsel %vm363, %v360, 0
      %v455 = vsel %vm363, %v361, 0
      %v458 = vsel %vm363, %v362, 0
      %vm460 = vcmask 1042432
      %v462 = vsel %vm460, %v330, 0
      %464 = vmatprep.subr.mxu0 0.0
      %465 = vmatpush1.msra.mxu0 0.0
      %466 = vmatprep.subr.mxu0 0.0
      %467 = vmatpush1.msra.mxu0 0.0
      %468 = vmatprep.subr.mxu0 0.0
      %469 = vmatpush1.msra.mxu0 0.0
      %470 = vmatprep.subr.mxu0 0.0
      %471 = vmatpush1.msra.mxu0 0.0
      %472 = vmatprep.subr.mxu0 0.0
      %473 = vmatpush1.msra.mxu0 0.0
      %474 = vmatprep.subr.mxu0 0.0
      %475 = vmatpush1.msra.mxu0 0.0
      %476 = vmatprep.subr.mxu0 0.0
      %477 = vmatpush1.msra.mxu0 %v462
      %478 = vmatprep.subr.mxu0 0.0
      %479 = vmatpush1.msra.mxu0 %v329
      %480 = vmatprep.subr.mxu0 0.0
      %481 = vmatpush1.msra.mxu0 %v328
      %482 = vmatprep.subr.mxu0 0.0
      %483 = vmatpush1.msra.mxu0 %v327
      %484 = vmatprep.subr.mxu0 0.0
      %485 = vmatpush1.msra.mxu0 %v326
      %486 = vmatprep.subr.mxu0 0.0
      %487 = vmatpush1.msra.mxu0 %v325
      %488 = vmatprep.subr.mxu0 0.0
      %489 = vmatpush1.msra.mxu0 %v324
      %490 = vmatprep.subr.mxu0 0.0
      %491 = vmatpush1.msra.mxu0 %v323
      %492 = vmatprep.subr.mxu0 0.0
      %493 = vmatpush1.msra.mxu0 %v322
      %494 = vmatprep.subr.mxu0 0.0
      %495 = vmatpush1.msra.mxu0 %v321
      %496 = vmatprep.subr.mxu0 0.0
      %497 = vmatpush2.msra.mxu0 0.0
      %498 = vmatprep.subr.mxu0 0.0
      %499 = vmatpush2.msra.mxu0 0.0
      %500 = vmatprep.subr.mxu0 0.0
      %501 = vmatpush2.msra.mxu0 0.0
      %502 = vmatprep.subr.mxu0 0.0
      %503 = vmatpush2.msra.mxu0 0.0
      %504 = vmatprep.subr.mxu0 0.0
      %505 = vmatpush2.msra.mxu0 0.0
      %506 = vmatprep.subr.mxu0 0.0
      %507 = vmatpush2.msra.mxu0 0.0
      %508 = vmatprep.subr.mxu0 0.0
      %509 = vmatpush2.msra.mxu0 0.0
      %510 = vmatprep.subr.mxu0 0.0
      %511 = vmatpush2.msra.mxu0 0.0
      %512 = vmatprep.subr.mxu0 0.0
      %513 = vmatpush2.msra.mxu0 0.0
      %514 = vmatprep.subr.mxu0 0.0
      %515 = vmatpush2.msra.mxu0 0.0
      %516 = vmatprep.subr.mxu0 0.0
      %517 = vmatpush2.msra.mxu0 0.0
      %518 = vmatprep.subr.mxu0 0.0
      %519 = vmatpush2.msra.mxu0 0.0
      %520 = vmatprep.subr.mxu0 0.0
      %521 = vmatpush2.msra.mxu0 0.0
      %522 = vmatprep.subr.mxu0 0.0
      %523 = vmatpush2.msra.mxu0 0.0
      %524 = vmatprep.subr.mxu0 0.0
      %525 = vmatpush2.msra.mxu0 0.0
      %526 = vmatprep.subr.mxu0 0.0
      %527 = vmatpush2.msra.mxu0 0.0
      %528 = vmatprep.mubr.f32.mxu0 0.0
      %529 = vmatmul.mubr.f32.gmra.mxu0 %v365
      %v530 = vpop.f32.mrf.mxu0
      %v531 = vadd.f32 0.0, %v530
      %v532 = vpop.f32.mrf.mxu0
      %533 = vmatprep.mubr.f32.mxu0 0.0
      %534 = vmatmul.mubr.f32.gmra.mxu0 %v368
      %v535 = vpop.f32.mrf.mxu0
      %v536 = vadd.f32 0.0, %v535
      %v537 = vpop.f32.mrf.mxu0
      %538 = vmatprep.mubr.f32.mxu0 0.0
      %539 = vmatmul.mubr.f32.gmra.mxu0 %v371
      %v540 = vpop.f32.mrf.mxu0
      %v541 = vadd.f32 0.0, %v540
      %v542 = vpop.f32.mrf.mxu0
      %543 = vmatprep.mubr.f32.mxu0 0.0
      %544 = vmatmul.mubr.f32.gmra.mxu0 %v374
      %v545 = vpop.f32.mrf.mxu0
      %v546 = vadd.f32 0.0, %v545
      %v547 = vpop.f32.mrf.mxu0
      %548 = vmatprep.mubr.f32.mxu0 0.0
      %549 = vmatmul.mubr.f32.gmra.mxu0 %v377
      %v550 = vpop.f32.mrf.mxu0
      %v551 = vadd.f32 0.0, %v550
      %v552 = vpop.f32.mrf.mxu0
      %553 = vmatprep.mubr.f32.mxu0 0.0
      %554 = vmatmul.mubr.f32.gmra.mxu0 %v380
      %v555 = vpop.f32.mrf.mxu0
      %v556 = vadd.f32 0.0, %v555
      %v557 = vpop.f32.mrf.mxu0
      %558 = vmatprep.mubr.f32.mxu0 0.0
      %559 = vmatmul.mubr.f32.gmra.mxu0 %v383
      %v560 = vpop.f32.mrf.mxu0
      %v561 = vadd.f32 0.0, %v560
      %v562 = vpop.f32.mrf.mxu0
      %563 = vmatprep.mubr.f32.mxu0 0.0
      %564 = vmatmul.mubr.f32.gmra.mxu0 %v386
      %v565 = vpop.f32.mrf.mxu0
      %v566 = vadd.f32 0.0, %v565
      %v567 = vpop.f32.mrf.mxu0
      %568 = vmatprep.mubr.f32.mxu0 0.0
      %569 = vmatmul.mubr.f32.gmra.mxu0 %v389
      %v570 = vpop.f32.mrf.mxu0
      %v571 = vadd.f32 0.0, %v570
      %v572 = vpop.f32.mrf.mxu0
      %573 = vmatprep.mubr.f32.mxu0 0.0
      %574 = vmatmul.mubr.f32.gmra.mxu0 %v392
      %v575 = vpop.f32.mrf.mxu0
      %v576 = vadd.f32 0.0, %v575
      %v577 = vpop.f32.mrf.mxu0
      %578 = vmatprep.mubr.f32.mxu0 0.0
      %579 = vmatmul.mubr.f32.gmra.mxu0 %v395
      %v580 = vpop.f32.mrf.mxu0
      %v581 = vadd.f32 0.0, %v580
      %v582 = vpop.f32.mrf.mxu0
      %583 = vmatprep.mubr.f32.mxu0 0.0
      %584 = vmatmul.mubr.f32.gmra.mxu0 %v398
      %v585 = vpop.f32.mrf.mxu0
      %v586 = vadd.f32 0.0, %v585
      %v587 = vpop.f32.mrf.mxu0
      %588 = vmatprep.mubr.f32.mxu0 0.0
      %589 = vmatmul.mubr.f32.gmra.mxu0 %v401
      %v590 = vpop.f32.mrf.mxu0
      %v591 = vadd.f32 0.0, %v590
      %v592 = vpop.f32.mrf.mxu0
      %593 = vmatprep.mubr.f32.mxu0 0.0
      %594 = vmatmul.mubr.f32.gmra.mxu0 %v404
      %v595 = vpop.f32.mrf.mxu0
      %v596 = vadd.f32 0.0, %v595
      %v597 = vpop.f32.mrf.mxu0
      %598 = vmatprep.mubr.f32.mxu0 0.0
      %599 = vmatmul.mubr.f32.gmra.mxu0 %v407
      %v600 = vpop.f32.mrf.mxu0
      %v601 = vadd.f32 0.0, %v600
      %v602 = vpop.f32.mrf.mxu0
      %603 = vmatprep.mubr.f32.mxu0 0.0
      %604 = vmatmul.mubr.f32.gmra.mxu0 %v410
      %v605 = vpop.f32.mrf.mxu0
      %v606 = vadd.f32 0.0, %v605
      %v607 = vpop.f32.mrf.mxu0
      %608 = vmatprep.mubr.f32.mxu0 0.0
      %609 = vmatmul.mubr.f32.gmra.mxu0 %v413
      %v610 = vpop.f32.mrf.mxu0
      %v611 = vadd.f32 0.0, %v610
      %v612 = vpop.f32.mrf.mxu0
      %613 = vmatprep.mubr.f32.mxu0 0.0
      %614 = vmatmul.mubr.f32.gmra.mxu0 %v416
      %v615 = vpop.f32.mrf.mxu0
      %v616 = vadd.f32 0.0, %v615
      %v617 = vpop.f32.mrf.mxu0
      %618 = vmatprep.mubr.f32.mxu0 0.0
      %619 = vmatmul.mubr.f32.gmra.mxu0 %v419
      %v620 = vpop.f32.mrf.mxu0
      %v621 = vadd.f32 0.0, %v620
      %v622 = vpop.f32.mrf.mxu0
      %623 = vmatprep.mubr.f32.mxu0 0.0
      %624 = vmatmul.mubr.f32.gmra.mxu0 %v422
      %v625 = vpop.f32.mrf.mxu0
      %v626 = vadd.f32 0.0, %v625
      %v627 = vpop.f32.mrf.mxu0
      %628 = vmatprep.mubr.f32.mxu0 0.0
      %629 = vmatmul.mubr.f32.gmra.mxu0 %v425
      %v630 = vpop.f32.mrf.mxu0
      %v631 = vadd.f32 0.0, %v630
      %v632 = vpop.f32.mrf.mxu0
      %633 = vmatprep.mubr.f32.mxu0 0.0
      %634 = vmatmul.mubr.f32.gmra.mxu0 %v428
      %v635 = vpop.f32.mrf.mxu0
      %v636 = vadd.f32 0.0, %v635
      %v637 = vpop.f32.mrf.mxu0
      %638 = vmatprep.mubr.f32.mxu0 0.0
      %639 = vmatmul.mubr.f32.gmra.mxu0 %v431
      %v640 = vpop.f32.mrf.mxu0
      %v641 = vadd.f32 0.0, %v640
      %v642 = vpop.f32.mrf.mxu0
      %643 = vmatprep.mubr.f32.mxu0 0.0
      %644 = vmatmul.mubr.f32.gmra.mxu0 %v434
      %v645 = vpop.f32.mrf.mxu0
      %v646 = vadd.f32 0.0, %v645
      %v647 = vpop.f32.mrf.mxu0
      %648 = vmatprep.mubr.f32.mxu0 0.0
      %649 = vmatmul.mubr.f32.gmra.mxu0 %v437
      %v650 = vpop.f32.mrf.mxu0
      %v651 = vadd.f32 0.0, %v650
      %v652 = vpop.f32.mrf.mxu0
      %653 = vmatprep.mubr.f32.mxu0 0.0
      %654 = vmatmul.mubr.f32.gmra.mxu0 %v440
      %v655 = vpop.f32.mrf.mxu0
      %v656 = vadd.f32 0.0, %v655
      %v657 = vpop.f32.mrf.mxu0
      %658 = vmatprep.mubr.f32.mxu0 0.0
      %659 = vmatmul.mubr.f32.gmra.mxu0 %v443
      %v660 = vpop.f32.mrf.mxu0
      %v661 = vadd.f32 0.0, %v660
      %v662 = vpop.f32.mrf.mxu0
      %663 = vmatprep.mubr.f32.mxu0 0.0
      %664 = vmatmul.mubr.f32.gmra.mxu0 %v446
      %v665 = vpop.f32.mrf.mxu0
      %v666 = vadd.f32 0.0, %v665
      %v667 = vpop.f32.mrf.mxu0
      %668 = vmatprep.mubr.f32.mxu0 0.0
      %669 = vmatmul.mubr.f32.gmra.mxu0 %v449
      %v670 = vpop.f32.mrf.mxu0
      %v671 = vadd.f32 0.0, %v670
      %v672 = vpop.f32.mrf.mxu0
      %673 = vmatprep.mubr.f32.mxu0 0.0
      %674 = vmatmul.mubr.f32.gmra.mxu0 %v452
      %v675 = vpop.f32.mrf.mxu0
      %v676 = vadd.f32 0.0, %v675
      %v677 = vpop.f32.mrf.mxu0
      %678 = vmatprep.mubr.f32.mxu0 0.0
      %679 = vmatmul.mubr.f32.gmra.mxu0 %v455
      %v680 = vpop.f32.mrf.mxu0
      %v681 = vadd.f32 0.0, %v680
      %v682 = vpop.f32.mrf.mxu0
      %683 = vmatprep.mubr.f32.mxu0 0.0
      %684 = vmatmul.mubr.f32.gmra.mxu0 %v458
      %v685 = vpop.f32.mrf.mxu0
      %v686 = vadd.f32 0.0, %v685
      %v687 = vpop.f32.mrf.mxu0
      %688 = vdwg.mxu0
      %v689 = vld [vmem:[%s301] sm:$0xff]
      %v690 = vld [vmem:[%s301 + $0x8] sm:$0xff]
      %v691 = vld [vmem:[%s301 + $0x10] sm:$0xff]
      %v692 = vld [vmem:[%s301 + $0x18] sm:$0xff]
      %v693 = vld [vmem:[%s301 + $0x20] sm:$0xff]
      %v694 = vld [vmem:[%s301 + $0x28] sm:$0xff]
      %v695 = vld [vmem:[%s301 + $0x30] sm:$0xff]
      %v696 = vld [vmem:[%s301 + $0x38] sm:$0xff]
      %v697 = vld [vmem:[%s301 + $0x40] sm:$0xff]
      %v698 = vld [vmem:[%s301 + $0x48] sm:$0xff]
      %v699 = vld [vmem:[%s301 + $0x50] sm:$0xff]
      %v700 = vld [vmem:[%s301 + $0x58] sm:$0xff]
      %v701 = vld [vmem:[%s301 + $0x60] sm:$0xff]
      %v702 = vld [vmem:[%s301 + $0x68] sm:$0xff]
      %v703 = vld [vmem:[%s301 + $0x70] sm:$0xff]
      %v704 = vld [vmem:[%s301 + $0x78] sm:$0xff]
      %v705 = vld [vmem:[%s301 + $0x80] sm:$0xff]
      %v706 = vld [vmem:[%s301 + $0x88] sm:$0xff]
      %v707 = vld [vmem:[%s301 + $0x90] sm:$0xff]
      %v708 = vld [vmem:[%s301 + $0x98] sm:$0xff]
      %v709 = vld [vmem:[%s301 + $0xa0] sm:$0xff]
      %v710 = vld [vmem:[%s301 + $0xa8] sm:$0xff]
      %v711 = vld [vmem:[%s301 + $0xb0] sm:$0xff]
      %v712 = vld [vmem:[%s301 + $0xb8] sm:$0xff]
      %v713 = vld [vmem:[%s301 + $0xc0] sm:$0xff]
      %v714 = vld [vmem:[%s301 + $0xc8] sm:$0xff]
      %v715 = vld [vmem:[%s301 + $0xd0] sm:$0xff]
      %v716 = vld [vmem:[%s301 + $0xd8] sm:$0xff]
      %v717 = vld [vmem:[%s301 + $0xe0] sm:$0xff]
      %v718 = vld [vmem:[%s301 + $0xe8] sm:$0xff]
      %v719 = vld [vmem:[%s301 + $0xf0] sm:$0xff]
      %v720 = vld [vmem:[%s301 + $0xf8] sm:$0xff]
      %v722 = vsel %vm363, %v689, 0
      %v725 = vsel %vm363, %v690, 0
      %v728 = vsel %vm363, %v691, 0
      %v731 = vsel %vm363, %v692, 0
      %v734 = vsel %vm363, %v693, 0
      %v737 = vsel %vm363, %v694, 0
      %v740 = vsel %vm363, %v695, 0
      %v743 = vsel %vm363, %v696, 0
      %v746 = vsel %vm363, %v697, 0
      %v749 = vsel %vm363, %v698, 0
      %v752 = vsel %vm363, %v699, 0
      %v755 = vsel %vm363, %v700, 0
      %v758 = vsel %vm363, %v701, 0
      %v761 = vsel %vm363, %v702, 0
      %v764 = vsel %vm363, %v703, 0
      %v767 = vsel %vm363, %v704, 0
      %v770 = vsel %vm363, %v705, 0
      %v773 = vsel %vm363, %v706, 0
      %v776 = vsel %vm363, %v707, 0
      %v779 = vsel %vm363, %v708, 0
      %v782 = vsel %vm363, %v709, 0
      %v785 = vsel %vm363, %v710, 0
      %v788 = vsel %vm363, %v711, 0
      %v791 = vsel %vm363, %v712, 0
      %v794 = vsel %vm363, %v713, 0
      %v797 = vsel %vm363, %v714, 0
      %v800 = vsel %vm363, %v715, 0
      %v803 = vsel %vm363, %v716, 0
      %v806 = vsel %vm363, %v717, 0
      %v809 = vsel %vm363, %v718, 0
      %v812 = vsel %vm363, %v719, 0
      %v815 = vsel %vm363, %v720, 0
      %817 = vmatprep.subr.mxu0 0.0
      %818 = vmatpush1.msra.mxu0 0.0
      %819 = vmatprep.subr.mxu0 0.0
      %820 = vmatpush1.msra.mxu0 0.0
      %821 = vmatprep.subr.mxu0 0.0
      %822 = vmatpush1.msra.mxu0 0.0
      %823 = vmatprep.subr.mxu0 0.0
      %824 = vmatpush1.msra.mxu0 0.0
      %825 = vmatprep.subr.mxu0 0.0
      %826 = vmatpush1.msra.mxu0 0.0
      %827 = vmatprep.subr.mxu0 0.0
      %828 = vmatpush1.msra.mxu0 0.0
      %829 = vmatprep.subr.mxu0 0.0
      %830 = vmatpush1.msra.mxu0 %v462
      %831 = vmatprep.subr.mxu0 0.0
      %832 = vmatpush1.msra.mxu0 %v329
      %833 = vmatprep.subr.mxu0 0.0
      %834 = vmatpush1.msra.mxu0 %v328
      %835 = vmatprep.subr.mxu0 0.0
      %836 = vmatpush1.msra.mxu0 %v327
      %837 = vmatprep.subr.mxu0 0.0
      %838 = vmatpush1.msra.mxu0 %v326
      %839 = vmatprep.subr.mxu0 0.0
      %840 = vmatpush1.msra.mxu0 %v325
      %841 = vmatprep.subr.mxu0 0.0
      %842 = vmatpush1.msra.mxu0 %v324
      %843 = vmatprep.subr.mxu0 0.0
      %844 = vmatpush1.msra.mxu0 %v323
      %845 = vmatprep.subr.mxu0 0.0
      %846 = vmatpush1.msra.mxu0 %v322
      %847 = vmatprep.subr.mxu0 0.0
      %848 = vmatpush1.msra.mxu0 %v321
      %849 = vmatprep.subr.mxu0 0.0
      %850 = vmatpush2.msra.mxu0 0.0
      %851 = vmatprep.subr.mxu0 0.0
      %852 = vmatpush2.msra.mxu0 0.0
      %853 = vmatprep.subr.mxu0 0.0
      %854 = vmatpush2.msra.mxu0 0.0
      %855 = vmatprep.subr.mxu0 0.0
      %856 = vmatpush2.msra.mxu0 0.0
      %857 = vmatprep.subr.mxu0 0.0
      %858 = vmatpush2.msra.mxu0 0.0
      %859 = vmatprep.subr.mxu0 0.0
      %860 = vmatpush2.msra.mxu0 0.0
      %861 = vmatprep.subr.mxu0 0.0
      %862 = vmatpush2.msra.mxu0 0.0
      %863 = vmatprep.subr.mxu0 0.0
      %864 = vmatpush2.msra.mxu0 0.0
      %865 = vmatprep.subr.mxu0 0.0
      %866 = vmatpush2.msra.mxu0 0.0
      %867 = vmatprep.subr.mxu0 0.0
      %868 = vmatpush2.msra.mxu0 0.0
      %869 = vmatprep.subr.mxu0 0.0
      %870 = vmatpush2.msra.mxu0 0.0
      %871 = vmatprep.subr.mxu0 0.0
      %872 = vmatpush2.msra.mxu0 0.0
      %873 = vmatprep.subr.mxu0 0.0
      %874 = vmatpush2.msra.mxu0 0.0
      %875 = vmatprep.subr.mxu0 0.0
      %876 = vmatpush2.msra.mxu0 0.0
      %877 = vmatprep.subr.mxu0 0.0
      %878 = vmatpush2.msra.mxu0 0.0
      %879 = vmatprep.subr.mxu0 0.0
      %880 = vmatpush2.msra.mxu0 0.0
      %881 = vmatprep.mubr.f32.mxu0 0.0
      %882 = vmatmul.mubr.f32.gmra.mxu0 %v722
      %v883 = vpop.f32.mrf.mxu0
      %v884 = vadd.f32 0.0, %v883
      %v885 = vpop.f32.mrf.mxu0
      %886 = vmatprep.mubr.f32.mxu0 0.0
      %887 = vmatmul.mubr.f32.gmra.mxu0 %v725
      %v888 = vpop.f32.mrf.mxu0
      %v889 = vadd.f32 0.0, %v888
      %v890 = vpop.f32.mrf.mxu0
      %891 = vmatprep.mubr.f32.mxu0 0.0
      %892 = vmatmul.mubr.f32.gmra.mxu0 %v728
      %v893 = vpop.f32.mrf.mxu0
      %v894 = vadd.f32 0.0, %v893
      %v895 = vpop.f32.mrf.mxu0
      %896 = vmatprep.mubr.f32.mxu0 0.0
      %897 = vmatmul.mubr.f32.gmra.mxu0 %v731
      %v898 = vpop.f32.mrf.mxu0
      %v899 = vadd.f32 0.0, %v898
      %v900 = vpop.f32.mrf.mxu0
      %901 = vmatprep.mubr.f32.mxu0 0.0
      %902 = vmatmul.mubr.f32.gmra.mxu0 %v734
      %v903 = vpop.f32.mrf.mxu0
      %v904 = vadd.f32 0.0, %v903
      %v905 = vpop.f32.mrf.mxu0
      %906 = vmatprep.mubr.f32.mxu0 0.0
      %907 = vmatmul.mubr.f32.gmra.mxu0 %v737
      %v908 = vpop.f32.mrf.mxu0
      %v909 = vadd.f32 0.0, %v908
      %v910 = vpop.f32.mrf.mxu0
      %911 = vmatprep.mubr.f32.mxu0 0.0
      %912 = vmatmul.mubr.f32.gmra.mxu0 %v740
      %v913 = vpop.f32.mrf.mxu0
      %v914 = vadd.f32 0.0, %v913
      %v915 = vpop.f32.mrf.mxu0
      %916 = vmatprep.mubr.f32.mxu0 0.0
      %917 = vmatmul.mubr.f32.gmra.mxu0 %v743
      %v918 = vpop.f32.mrf.mxu0
      %v919 = vadd.f32 0.0, %v918
      %v920 = vpop.f32.mrf.mxu0
      %921 = vmatprep.mubr.f32.mxu0 0.0
      %922 = vmatmul.mubr.f32.gmra.mxu0 %v746
      %v923 = vpop.f32.mrf.mxu0
      %v924 = vadd.f32 0.0, %v923
      %v925 = vpop.f32.mrf.mxu0
      %926 = vmatprep.mubr.f32.mxu0 0.0
      %927 = vmatmul.mubr.f32.gmra.mxu0 %v749
      %v928 = vpop.f32.mrf.mxu0
      %v929 = vadd.f32 0.0, %v928
      %v930 = vpop.f32.mrf.mxu0
      %931 = vmatprep.mubr.f32.mxu0 0.0
      %932 = vmatmul.mubr.f32.gmra.mxu0 %v752
      %v933 = vpop.f32.mrf.mxu0
      %v934 = vadd.f32 0.0, %v933
      %v935 = vpop.f32.mrf.mxu0
      %936 = vmatprep.mubr.f32.mxu0 0.0
      %937 = vmatmul.mubr.f32.gmra.mxu0 %v755
      %v938 = vpop.f32.mrf.mxu0
      %v939 = vadd.f32 0.0, %v938
      %v940 = vpop.f32.mrf.mxu0
      %941 = vmatprep.mubr.f32.mxu0 0.0
      %942 = vmatmul.mubr.f32.gmra.mxu0 %v758
      %v943 = vpop.f32.mrf.mxu0
      %v944 = vadd.f32 0.0, %v943
      %v945 = vpop.f32.mrf.mxu0
      %946 = vmatprep.mubr.f32.mxu0 0.0
      %947 = vmatmul.mubr.f32.gmra.mxu0 %v761
      %v948 = vpop.f32.mrf.mxu0
      %v949 = vadd.f32 0.0, %v948
      %v950 = vpop.f32.mrf.mxu0
      %951 = vmatprep.mubr.f32.mxu0 0.0
      %952 = vmatmul.mubr.f32.gmra.mxu0 %v764
      %v953 = vpop.f32.mrf.mxu0
      %v954 = vadd.f32 0.0, %v953
      %v955 = vpop.f32.mrf.mxu0
      %956 = vmatprep.mubr.f32.mxu0 0.0
      %957 = vmatmul.mubr.f32.gmra.mxu0 %v767
      %v958 = vpop.f32.mrf.mxu0
      %v959 = vadd.f32 0.0, %v958
      %v960 = vpop.f32.mrf.mxu0
      %961 = vmatprep.mubr.f32.mxu0 0.0
      %962 = vmatmul.mubr.f32.gmra.mxu0 %v770
      %v963 = vpop.f32.mrf.mxu0
      %v964 = vadd.f32 0.0, %v963
      %v965 = vpop.f32.mrf.mxu0
      %966 = vmatprep.mubr.f32.mxu0 0.0
      %967 = vmatmul.mubr.f32.gmra.mxu0 %v773
      %v968 = vpop.f32.mrf.mxu0
      %v969 = vadd.f32 0.0, %v968
      %v970 = vpop.f32.mrf.mxu0
      %971 = vmatprep.mubr.f32.mxu0 0.0
      %972 = vmatmul.mubr.f32.gmra.mxu0 %v776
      %v973 = vpop.f32.mrf.mxu0
      %v974 = vadd.f32 0.0, %v973
      %v975 = vpop.f32.mrf.mxu0
      %976 = vmatprep.mubr.f32.mxu0 0.0
      %977 = vmatmul.mubr.f32.gmra.mxu0 %v779
      %v978 = vpop.f32.mrf.mxu0
      %v979 = vadd.f32 0.0, %v978
      %v980 = vpop.f32.mrf.mxu0
      %981 = vmatprep.mubr.f32.mxu0 0.0
      %982 = vmatmul.mubr.f32.gmra.mxu0 %v782
      %v983 = vpop.f32.mrf.mxu0
      %v984 = vadd.f32 0.0, %v983
      %v985 = vpop.f32.mrf.mxu0
      %986 = vmatprep.mubr.f32.mxu0 0.0
      %987 = vmatmul.mubr.f32.gmra.mxu0 %v785
      %v988 = vpop.f32.mrf.mxu0
      %v989 = vadd.f32 0.0, %v988
      %v990 = vpop.f32.mrf.mxu0
      %991 = vmatprep.mubr.f32.mxu0 0.0
      %992 = vmatmul.mubr.f32.gmra.mxu0 %v788
      %v993 = vpop.f32.mrf.mxu0
      %v994 = vadd.f32 0.0, %v993
      %v995 = vpop.f32.mrf.mxu0
      %996 = vmatprep.mubr.f32.mxu0 0.0
      %997 = vmatmul.mubr.f32.gmra.mxu0 %v791
      %v998 = vpop.f32.mrf.mxu0
      %v999 = vadd.f32 0.0, %v998
      %v1000 = vpop.f32.mrf.mxu0
      %1001 = vmatprep.mubr.f32.mxu0 0.0
      %1002 = vmatmul.mubr.f32.gmra.mxu0 %v794
      %v1003 = vpop.f32.mrf.mxu0
      %v1004 = vadd.f32 0.0, %v1003
      %v1005 = vpop.f32.mrf.mxu0
      %1006 = vmatprep.mubr.f32.mxu0 0.0
      %1007 = vmatmul.mubr.f32.gmra.mxu0 %v797
      %v1008 = vpop.f32.mrf.mxu0
      %v1009 = vadd.f32 0.0, %v1008
      %v1010 = vpop.f32.mrf.mxu0
      %1011 = vmatprep.mubr.f32.mxu0 0.0
      %1012 = vmatmul.mubr.f32.gmra.mxu0 %v800
      %v1013 = vpop.f32.mrf.mxu0
      %v1014 = vadd.f32 0.0, %v1013
      %v1015 = vpop.f32.mrf.mxu0
      %1016 = vmatprep.mubr.f32.mxu0 0.0
      %1017 = vmatmul.mubr.f32.gmra.mxu0 %v803
      %v1018 = vpop.f32.mrf.mxu0
      %v1019 = vadd.f32 0.0, %v1018
      %v1020 = vpop.f32.mrf.mxu0
      %1021 = vmatprep.mubr.f32.mxu0 0.0
      %1022 = vmatmul.mubr.f32.gmra.mxu0 %v806
      %v1023 = vpop.f32.mrf.mxu0
      %v1024 = vadd.f32 0.0, %v1023
      %v1025 = vpop.f32.mrf.mxu0
      %1026 = vmatprep.mubr.f32.mxu0 0.0
      %1027 = vmatmul.mubr.f32.gmra.mxu0 %v809
      %v1028 = vpop.f32.mrf.mxu0
      %v1029 = vadd.f32 0.0, %v1028
      %v1030 = vpop.f32.mrf.mxu0
      %1031 = vmatprep.mubr.f32.mxu0 0.0
      %1032 = vmatmul.mubr.f32.gmra.mxu0 %v812
      %v1033 = vpop.f32.mrf.mxu0
      %v1034 = vadd.f32 0.0, %v1033
      %v1035 = vpop.f32.mrf.mxu0
      %1036 = vmatprep.mubr.f32.mxu0 0.0
      %1037 = vmatmul.mubr.f32.gmra.mxu0 %v815
      %v1038 = vpop.f32.mrf.mxu0
      %v1039 = vadd.f32 0.0, %v1038
      %v1040 = vpop.f32.mrf.mxu0
      %1041 = vdwg.mxu0
      %v1042 = vmax.f32 %v531, %v884
      %v1043 = vmax.f32 %v536, %v889
      %v1044 = vmax.f32 %v541, %v894
      %v1045 = vmax.f32 %v546, %v899
      %v1046 = vmax.f32 %v551, %v904
      %v1047 = vmax.f32 %v556, %v909
      %v1048 = vmax.f32 %v561, %v914
      %v1049 = vmax.f32 %v566, %v919
      %v1050 = vmax.f32 %v571, %v924
      %v1051 = vmax.f32 %v576, %v929
      %v1052 = vmax.f32 %v581, %v934
      %v1053 = vmax.f32 %v586, %v939
      %v1054 = vmax.f32 %v591, %v944
      %v1055 = vmax.f32 %v596, %v949
      %v1056 = vmax.f32 %v601, %v954
      %v1057 = vmax.f32 %v606, %v959
      %v1058 = vmax.f32 %v611, %v964
      %v1059 = vmax.f32 %v616, %v969
      %v1060 = vmax.f32 %v621, %v974
      %v1061 = vmax.f32 %v626, %v979
      %v1062 = vmax.f32 %v631, %v984
      %v1063 = vmax.f32 %v636, %v989
      %v1064 = vmax.f32 %v641, %v994
      %v1065 = vmax.f32 %v646, %v999
      %v1066 = vmax.f32 %v651, %v1004
      %v1067 = vmax.f32 %v656, %v1009
      %v1068 = vmax.f32 %v661, %v1014
      %v1069 = vmax.f32 %v666, %v1019
      %v1070 = vmax.f32 %v671, %v1024
      %v1071 = vmax.f32 %v676, %v1029
      %v1072 = vmax.f32 %v681, %v1034
      %v1073 = vmax.f32 %v686, %v1039
      %v1074 = vld [vmem:[%s307] sm:$0xff]
      %v1075 = vld [vmem:[%s307 + $0x8] sm:$0xff]
      %v1076 = vld [vmem:[%s307 + $0x10] sm:$0xff]
      %v1077 = vld [vmem:[%s307 + $0x18] sm:$0xff]
      %v1078 = vld [vmem:[%s307 + $0x20] sm:$0xff]
      %v1079 = vld [vmem:[%s307 + $0x28] sm:$0xff]
      %v1080 = vld [vmem:[%s307 + $0x30] sm:$0xff]
      %v1081 = vld [vmem:[%s307 + $0x38] sm:$0xff]
      %v1082 = vld [vmem:[%s307 + $0x40] sm:$0xff]
      %v1083 = vld [vmem:[%s307 + $0x48] sm:$0xff]
      %v1084 = vld [vmem:[%s307 + $0x50] sm:$0xff]
      %v1085 = vld [vmem:[%s307 + $0x58] sm:$0xff]
      %v1086 = vld [vmem:[%s307 + $0x60] sm:$0xff]
      %v1087 = vld [vmem:[%s307 + $0x68] sm:$0xff]
      %v1088 = vld [vmem:[%s307 + $0x70] sm:$0xff]
      %v1089 = vld [vmem:[%s307 + $0x78] sm:$0xff]
      %v1090 = vld [vmem:[%s307 + $0x80] sm:$0xff]
      %v1091 = vld [vmem:[%s307 + $0x88] sm:$0xff]
      %v1092 = vld [vmem:[%s307 + $0x90] sm:$0xff]
      %v1093 = vld [vmem:[%s307 + $0x98] sm:$0xff]
      %v1094 = vld [vmem:[%s307 + $0xa0] sm:$0xff]
      %v1095 = vld [vmem:[%s307 + $0xa8] sm:$0xff]
      %v1096 = vld [vmem:[%s307 + $0xb0] sm:$0xff]
      %v1097 = vld [vmem:[%s307 + $0xb8] sm:$0xff]
      %v1098 = vld [vmem:[%s307 + $0xc0] sm:$0xff]
      %v1099 = vld [vmem:[%s307 + $0xc8] sm:$0xff]
      %v1100 = vld [vmem:[%s307 + $0xd0] sm:$0xff]
      %v1101 = vld [vmem:[%s307 + $0xd8] sm:$0xff]
      %v1102 = vld [vmem:[%s307 + $0xe0] sm:$0xff]
      %v1103 = vld [vmem:[%s307 + $0xe8] sm:$0xff]
      %v1104 = vld [vmem:[%s307 + $0xf0] sm:$0xff]
      %v1105 = vld [vmem:[%s307 + $0xf8] sm:$0xff]
      %v1107 = vsel %vm363, %v1074, 0
      %v1110 = vsel %vm363, %v1075, 0
      %v1113 = vsel %vm363, %v1076, 0
      %v1116 = vsel %vm363, %v1077, 0
      %v1119 = vsel %vm363, %v1078, 0
      %v1122 = vsel %vm363, %v1079, 0
      %v1125 = vsel %vm363, %v1080, 0
      %v1128 = vsel %vm363, %v1081, 0
      %v1131 = vsel %vm363, %v1082, 0
      %v1134 = vsel %vm363, %v1083, 0
      %v1137 = vsel %vm363, %v1084, 0
      %v1140 = vsel %vm363, %v1085, 0
      %v1143 = vsel %vm363, %v1086, 0
      %v1146 = vsel %vm363, %v1087, 0
      %v1149 = vsel %vm363, %v1088, 0
      %v1152 = vsel %vm363, %v1089, 0
      %v1155 = vsel %vm363, %v1090, 0
      %v1158 = vsel %vm363, %v1091, 0
      %v1161 = vsel %vm363, %v1092, 0
      %v1164 = vsel %vm363, %v1093, 0
      %v1167 = vsel %vm363, %v1094, 0
      %v1170 = vsel %vm363, %v1095, 0
      %v1173 = vsel %vm363, %v1096, 0
      %v1176 = vsel %vm363, %v1097, 0
      %v1179 = vsel %vm363, %v1098, 0
      %v1182 = vsel %vm363, %v1099, 0
      %v1185 = vsel %vm363, %v1100, 0
      %v1188 = vsel %vm363, %v1101, 0
      %v1191 = vsel %vm363, %v1102, 0
      %v1194 = vsel %vm363, %v1103, 0
      %v1197 = vsel %vm363, %v1104, 0
      %v1200 = vsel %vm363, %v1105, 0
      %1202 = vmatprep.subr.mxu0 0.0
      %1203 = vmatpush1.msra.mxu0 0.0
      %1204 = vmatprep.subr.mxu0 0.0
      %1205 = vmatpush1.msra.mxu0 0.0
      %1206 = vmatprep.subr.mxu0 0.0
      %1207 = vmatpush1.msra.mxu0 0.0
      %1208 = vmatprep.subr.mxu0 0.0
      %1209 = vmatpush1.msra.mxu0 0.0
      %1210 = vmatprep.subr.mxu0 0.0
      %1211 = vmatpush1.msra.mxu0 0.0
      %1212 = vmatprep.subr.mxu0 0.0
      %1213 = vmatpush1.msra.mxu0 0.0
      %1214 = vmatprep.subr.mxu0 0.0
      %1215 = vmatpush1.msra.mxu0 %v462
      %1216 = vmatprep.subr.mxu0 0.0
      %1217 = vmatpush1.msra.mxu0 %v329
      %1218 = vmatprep.subr.mxu0 0.0
      %1219 = vmatpush1.msra.mxu0 %v328
      %1220 = vmatprep.subr.mxu0 0.0
      %1221 = vmatpush1.msra.mxu0 %v327
      %1222 = vmatprep.subr.mxu0 0.0
      %1223 = vmatpush1.msra.mxu0 %v326
      %1224 = vmatprep.subr.mxu0 0.0
      %1225 = vmatpush1.msra.mxu0 %v325
      %1226 = vmatprep.subr.mxu0 0.0
      %1227 = vmatpush1.msra.mxu0 %v324
      %1228 = vmatprep.subr.mxu0 0.0
      %1229 = vmatpush1.msra.mxu0 %v323
      %1230 = vmatprep.subr.mxu0 0.0
      %1231 = vmatpush1.msra.mxu0 %v322
      %1232 = vmatprep.subr.mxu0 0.0
      %1233 = vmatpush1.msra.mxu0 %v321
      %1234 = vmatprep.subr.mxu0 0.0
      %1235 = vmatpush2.msra.mxu0 0.0
      %1236 = vmatprep.subr.mxu0 0.0
      %1237 = vmatpush2.msra.mxu0 0.0
      %1238 = vmatprep.subr.mxu0 0.0
      %1239 = vmatpush2.msra.mxu0 0.0
      %1240 = vmatprep.subr.mxu0 0.0
      %1241 = vmatpush2.msra.mxu0 0.0
      %1242 = vmatprep.subr.mxu0 0.0
      %1243 = vmatpush2.msra.mxu0 0.0
      %1244 = vmatprep.subr.mxu0 0.0
      %1245 = vmatpush2.msra.mxu0 0.0
      %1246 = vmatprep.subr.mxu0 0.0
      %1247 = vmatpush2.msra.mxu0 0.0
      %1248 = vmatprep.subr.mxu0 0.0
      %1249 = vmatpush2.msra.mxu0 0.0
      %1250 = vmatprep.subr.mxu0 0.0
      %1251 = vmatpush2.msra.mxu0 0.0
      %1252 = vmatprep.subr.mxu0 0.0
      %1253 = vmatpush2.msra.mxu0 0.0
      %1254 = vmatprep.subr.mxu0 0.0
      %1255 = vmatpush2.msra.mxu0 0.0
      %1256 = vmatprep.subr.mxu0 0.0
      %1257 = vmatpush2.msra.mxu0 0.0
      %1258 = vmatprep.subr.mxu0 0.0
      %1259 = vmatpush2.msra.mxu0 0.0
      %1260 = vmatprep.subr.mxu0 0.0
      %1261 = vmatpush2.msra.mxu0 0.0
      %1262 = vmatprep.subr.mxu0 0.0
      %1263 = vmatpush2.msra.mxu0 0.0
      %1264 = vmatprep.subr.mxu0 0.0
      %1265 = vmatpush2.msra.mxu0 0.0
      %1266 = vmatprep.mubr.f32.mxu0 0.0
      %1267 = vmatmul.mubr.f32.gmra.mxu0 %v1107
      %v1268 = vpop.f32.mrf.mxu0
      %v1269 = vadd.f32 0.0, %v1268
      %v1270 = vpop.f32.mrf.mxu0
      %1271 = vmatprep.mubr.f32.mxu0 0.0
      %1272 = vmatmul.mubr.f32.gmra.mxu0 %v1110
      %v1273 = vpop.f32.mrf.mxu0
      %v1274 = vadd.f32 0.0, %v1273
      %v1275 = vpop.f32.mrf.mxu0
      %1276 = vmatprep.mubr.f32.mxu0 0.0
      %1277 = vmatmul.mubr.f32.gmra.mxu0 %v1113
      %v1278 = vpop.f32.mrf.mxu0
      %v1279 = vadd.f32 0.0, %v1278
      %v1280 = vpop.f32.mrf.mxu0
      %1281 = vmatprep.mubr.f32.mxu0 0.0
      %1282 = vmatmul.mubr.f32.gmra.mxu0 %v1116
      %v1283 = vpop.f32.mrf.mxu0
      %v1284 = vadd.f32 0.0, %v1283
      %v1285 = vpop.f32.mrf.mxu0
      %1286 = vmatprep.mubr.f32.mxu0 0.0
      %1287 = vmatmul.mubr.f32.gmra.mxu0 %v1119
      %v1288 = vpop.f32.mrf.mxu0
      %v1289 = vadd.f32 0.0, %v1288
      %v1290 = vpop.f32.mrf.mxu0
      %1291 = vmatprep.mubr.f32.mxu0 0.0
      %1292 = vmatmul.mubr.f32.gmra.mxu0 %v1122
      %v1293 = vpop.f32.mrf.mxu0
      %v1294 = vadd.f32 0.0, %v1293
      %v1295 = vpop.f32.mrf.mxu0
      %1296 = vmatprep.mubr.f32.mxu0 0.0
      %1297 = vmatmul.mubr.f32.gmra.mxu0 %v1125
      %v1298 = vpop.f32.mrf.mxu0
      %v1299 = vadd.f32 0.0, %v1298
      %v1300 = vpop.f32.mrf.mxu0
      %1301 = vmatprep.mubr.f32.mxu0 0.0
      %1302 = vmatmul.mubr.f32.gmra.mxu0 %v1128
      %v1303 = vpop.f32.mrf.mxu0
      %v1304 = vadd.f32 0.0, %v1303
      %v1305 = vpop.f32.mrf.mxu0
      %1306 = vmatprep.mubr.f32.mxu0 0.0
      %1307 = vmatmul.mubr.f32.gmra.mxu0 %v1131
      %v1308 = vpop.f32.mrf.mxu0
      %v1309 = vadd.f32 0.0, %v1308
      %v1310 = vpop.f32.mrf.mxu0
      %1311 = vmatprep.mubr.f32.mxu0 0.0
      %1312 = vmatmul.mubr.f32.gmra.mxu0 %v1134
      %v1313 = vpop.f32.mrf.mxu0
      %v1314 = vadd.f32 0.0, %v1313
      %v1315 = vpop.f32.mrf.mxu0
      %1316 = vmatprep.mubr.f32.mxu0 0.0
      %1317 = vmatmul.mubr.f32.gmra.mxu0 %v1137
      %v1318 = vpop.f32.mrf.mxu0
      %v1319 = vadd.f32 0.0, %v1318
      %v1320 = vpop.f32.mrf.mxu0
      %1321 = vmatprep.mubr.f32.mxu0 0.0
      %1322 = vmatmul.mubr.f32.gmra.mxu0 %v1140
      %v1323 = vpop.f32.mrf.mxu0
      %v1324 = vadd.f32 0.0, %v1323
      %v1325 = vpop.f32.mrf.mxu0
      %1326 = vmatprep.mubr.f32.mxu0 0.0
      %1327 = vmatmul.mubr.f32.gmra.mxu0 %v1143
      %v1328 = vpop.f32.mrf.mxu0
      %v1329 = vadd.f32 0.0, %v1328
      %v1330 = vpop.f32.mrf.mxu0
      %1331 = vmatprep.mubr.f32.mxu0 0.0
      %1332 = vmatmul.mubr.f32.gmra.mxu0 %v1146
      %v1333 = vpop.f32.mrf.mxu0
      %v1334 = vadd.f32 0.0, %v1333
      %v1335 = vpop.f32.mrf.mxu0
      %1336 = vmatprep.mubr.f32.mxu0 0.0
      %1337 = vmatmul.mubr.f32.gmra.mxu0 %v1149
      %v1338 = vpop.f32.mrf.mxu0
      %v1339 = vadd.f32 0.0, %v1338
      %v1340 = vpop.f32.mrf.mxu0
      %1341 = vmatprep.mubr.f32.mxu0 0.0
      %1342 = vmatmul.mubr.f32.gmra.mxu0 %v1152
      %v1343 = vpop.f32.mrf.mxu0
      %v1344 = vadd.f32 0.0, %v1343
      %v1345 = vpop.f32.mrf.mxu0
      %1346 = vmatprep.mubr.f32.mxu0 0.0
      %1347 = vmatmul.mubr.f32.gmra.mxu0 %v1155
      %v1348 = vpop.f32.mrf.mxu0
      %v1349 = vadd.f32 0.0, %v1348
      %v1350 = vpop.f32.mrf.mxu0
      %1351 = vmatprep.mubr.f32.mxu0 0.0
      %1352 = vmatmul.mubr.f32.gmra.mxu0 %v1158
      %v1353 = vpop.f32.mrf.mxu0
      %v1354 = vadd.f32 0.0, %v1353
      %v1355 = vpop.f32.mrf.mxu0
      %1356 = vmatprep.mubr.f32.mxu0 0.0
      %1357 = vmatmul.mubr.f32.gmra.mxu0 %v1161
      %v1358 = vpop.f32.mrf.mxu0
      %v1359 = vadd.f32 0.0, %v1358
      %v1360 = vpop.f32.mrf.mxu0
      %1361 = vmatprep.mubr.f32.mxu0 0.0
      %1362 = vmatmul.mubr.f32.gmra.mxu0 %v1164
      %v1363 = vpop.f32.mrf.mxu0
      %v1364 = vadd.f32 0.0, %v1363
      %v1365 = vpop.f32.mrf.mxu0
      %1366 = vmatprep.mubr.f32.mxu0 0.0
      %1367 = vmatmul.mubr.f32.gmra.mxu0 %v1167
      %v1368 = vpop.f32.mrf.mxu0
      %v1369 = vadd.f32 0.0, %v1368
      %v1370 = vpop.f32.mrf.mxu0
      %1371 = vmatprep.mubr.f32.mxu0 0.0
      %1372 = vmatmul.mubr.f32.gmra.mxu0 %v1170
      %v1373 = vpop.f32.mrf.mxu0
      %v1374 = vadd.f32 0.0, %v1373
      %v1375 = vpop.f32.mrf.mxu0
      %1376 = vmatprep.mubr.f32.mxu0 0.0
      %1377 = vmatmul.mubr.f32.gmra.mxu0 %v1173
      %v1378 = vpop.f32.mrf.mxu0
      %v1379 = vadd.f32 0.0, %v1378
      %v1380 = vpop.f32.mrf.mxu0
      %1381 = vmatprep.mubr.f32.mxu0 0.0
      %1382 = vmatmul.mubr.f32.gmra.mxu0 %v1176
      %v1383 = vpop.f32.mrf.mxu0
      %v1384 = vadd.f32 0.0, %v1383
      %v1385 = vpop.f32.mrf.mxu0
      %1386 = vmatprep.mubr.f32.mxu0 0.0
      %1387 = vmatmul.mubr.f32.gmra.mxu0 %v1179
      %v1388 = vpop.f32.mrf.mxu0
      %v1389 = vadd.f32 0.0, %v1388
      %v1390 = vpop.f32.mrf.mxu0
      %1391 = vmatprep.mubr.f32.mxu0 0.0
      %1392 = vmatmul.mubr.f32.gmra.mxu0 %v1182
      %v1393 = vpop.f32.mrf.mxu0
      %v1394 = vadd.f32 0.0, %v1393
      %v1395 = vpop.f32.mrf.mxu0
      %1396 = vmatprep.mubr.f32.mxu0 0.0
      %1397 = vmatmul.mubr.f32.gmra.mxu0 %v1185
      %v1398 = vpop.f32.mrf.mxu0
      %v1399 = vadd.f32 0.0, %v1398
      %v1400 = vpop.f32.mrf.mxu0
      %1401 = vmatprep.mubr.f32.mxu0 0.0
      %1402 = vmatmul.mubr.f32.gmra.mxu0 %v1188
      %v1403 = vpop.f32.mrf.mxu0
      %v1404 = vadd.f32 0.0, %v1403
      %v1405 = vpop.f32.mrf.mxu0
      %1406 = vmatprep.mubr.f32.mxu0 0.0
      %1407 = vmatmul.mubr.f32.gmra.mxu0 %v1191
      %v1408 = vpop.f32.mrf.mxu0
      %v1409 = vadd.f32 0.0, %v1408
      %v1410 = vpop.f32.mrf.mxu0
      %1411 = vmatprep.mubr.f32.mxu0 0.0
      %1412 = vmatmul.mubr.f32.gmra.mxu0 %v1194
      %v1413 = vpop.f32.mrf.mxu0
      %v1414 = vadd.f32 0.0, %v1413
      %v1415 = vpop.f32.mrf.mxu0
      %1416 = vmatprep.mubr.f32.mxu0 0.0
      %1417 = vmatmul.mubr.f32.gmra.mxu0 %v1197
      %v1418 = vpop.f32.mrf.mxu0
      %v1419 = vadd.f32 0.0, %v1418
      %v1420 = vpop.f32.mrf.mxu0
      %1421 = vmatprep.mubr.f32.mxu0 0.0
      %1422 = vmatmul.mubr.f32.gmra.mxu0 %v1200
      %v1423 = vpop.f32.mrf.mxu0
      %v1424 = vadd.f32 0.0, %v1423
      %v1425 = vpop.f32.mrf.mxu0
      %1426 = vdwg.mxu0
      %v1427 = vmax.f32 %v1042, %v1269
      %v1428 = vmax.f32 %v1043, %v1274
      %v1429 = vmax.f32 %v1044, %v1279
      %v1430 = vmax.f32 %v1045, %v1284
      %v1431 = vmax.f32 %v1046, %v1289
      %v1432 = vmax.f32 %v1047, %v1294
      %v1433 = vmax.f32 %v1048, %v1299
      %v1434 = vmax.f32 %v1049, %v1304
      %v1435 = vmax.f32 %v1050, %v1309
      %v1436 = vmax.f32 %v1051, %v1314
      %v1437 = vmax.f32 %v1052, %v1319
      %v1438 = vmax.f32 %v1053, %v1324
      %v1439 = vmax.f32 %v1054, %v1329
      %v1440 = vmax.f32 %v1055, %v1334
      %v1441 = vmax.f32 %v1056, %v1339
      %v1442 = vmax.f32 %v1057, %v1344
      %v1443 = vmax.f32 %v1058, %v1349
      %v1444 = vmax.f32 %v1059, %v1354
      %v1445 = vmax.f32 %v1060, %v1359
      %v1446 = vmax.f32 %v1061, %v1364
      %v1447 = vmax.f32 %v1062, %v1369
      %v1448 = vmax.f32 %v1063, %v1374
      %v1449 = vmax.f32 %v1064, %v1379
      %v1450 = vmax.f32 %v1065, %v1384
      %v1451 = vmax.f32 %v1066, %v1389
      %v1452 = vmax.f32 %v1067, %v1394
      %v1453 = vmax.f32 %v1068, %v1399
      %v1454 = vmax.f32 %v1069, %v1404
      %v1455 = vmax.f32 %v1070, %v1409
      %v1456 = vmax.f32 %v1071, %v1414
      %v1457 = vmax.f32 %v1072, %v1419
      %v1458 = vmax.f32 %v1073, %v1424
      %v1459 = vld [vmem:[%s313] sm:$0xff]
      %v1460 = vld [vmem:[%s313 + $0x8] sm:$0xff]
      %v1461 = vld [vmem:[%s313 + $0x10] sm:$0xff]
      %v1462 = vld [vmem:[%s313 + $0x18] sm:$0xff]
      %v1463 = vld [vmem:[%s313 + $0x20] sm:$0xff]
      %v1464 = vld [vmem:[%s313 + $0x28] sm:$0xff]
      %v1465 = vld [vmem:[%s313 + $0x30] sm:$0xff]
      %v1466 = vld [vmem:[%s313 + $0x38] sm:$0xff]
      %v1467 = vld [vmem:[%s313 + $0x40] sm:$0xff]
      %v1468 = vld [vmem:[%s313 + $0x48] sm:$0xff]
      %v1469 = vld [vmem:[%s313 + $0x50] sm:$0xff]
      %v1470 = vld [vmem:[%s313 + $0x58] sm:$0xff]
      %v1471 = vld [vmem:[%s313 + $0x60] sm:$0xff]
      %v1472 = vld [vmem:[%s313 + $0x68] sm:$0xff]
      %v1473 = vld [vmem:[%s313 + $0x70] sm:$0xff]
      %v1474 = vld [vmem:[%s313 + $0x78] sm:$0xff]
      %v1475 = vld [vmem:[%s313 + $0x80] sm:$0xff]
      %v1476 = vld [vmem:[%s313 + $0x88] sm:$0xff]
      %v1477 = vld [vmem:[%s313 + $0x90] sm:$0xff]
      %v1478 = vld [vmem:[%s313 + $0x98] sm:$0xff]
      %v1479 = vld [vmem:[%s313 + $0xa0] sm:$0xff]
      %v1480 = vld [vmem:[%s313 + $0xa8] sm:$0xff]
      %v1481 = vld [vmem:[%s313 + $0xb0] sm:$0xff]
      %v1482 = vld [vmem:[%s313 + $0xb8] sm:$0xff]
      %v1483 = vld [vmem:[%s313 + $0xc0] sm:$0xff]
      %v1484 = vld [vmem:[%s313 + $0xc8] sm:$0xff]
      %v1485 = vld [vmem:[%s313 + $0xd0] sm:$0xff]
      %v1486 = vld [vmem:[%s313 + $0xd8] sm:$0xff]
      %v1487 = vld [vmem:[%s313 + $0xe0] sm:$0xff]
      %v1488 = vld [vmem:[%s313 + $0xe8] sm:$0xff]
      %v1489 = vld [vmem:[%s313 + $0xf0] sm:$0xff]
      %v1490 = vld [vmem:[%s313 + $0xf8] sm:$0xff]
      %v1492 = vsel %vm363, %v1459, 0
      %v1495 = vsel %vm363, %v1460, 0
      %v1498 = vsel %vm363, %v1461, 0
      %v1501 = vsel %vm363, %v1462, 0
      %v1504 = vsel %vm363, %v1463, 0
      %v1507 = vsel %vm363, %v1464, 0
      %v1510 = vsel %vm363, %v1465, 0
      %v1513 = vsel %vm363, %v1466, 0
      %v1516 = vsel %vm363, %v1467, 0
      %v1519 = vsel %vm363, %v1468, 0
      %v1522 = vsel %vm363, %v1469, 0
      %v1525 = vsel %vm363, %v1470, 0
      %v1528 = vsel %vm363, %v1471, 0
      %v1531 = vsel %vm363, %v1472, 0
      %v1534 = vsel %vm363, %v1473, 0
      %v1537 = vsel %vm363, %v1474, 0
      %v1540 = vsel %vm363, %v1475, 0
      %v1543 = vsel %vm363, %v1476, 0
      %v1546 = vsel %vm363, %v1477, 0
      %v1549 = vsel %vm363, %v1478, 0
      %v1552 = vsel %vm363, %v1479, 0
      %v1555 = vsel %vm363, %v1480, 0
      %v1558 = vsel %vm363, %v1481, 0
      %v1561 = vsel %vm363, %v1482, 0
      %v1564 = vsel %vm363, %v1483, 0
      %v1567 = vsel %vm363, %v1484, 0
      %v1570 = vsel %vm363, %v1485, 0
      %v1573 = vsel %vm363, %v1486, 0
      %v1576 = vsel %vm363, %v1487, 0
      %v1579 = vsel %vm363, %v1488, 0
      %v1582 = vsel %vm363, %v1489, 0
      %v1585 = vsel %vm363, %v1490, 0
      %1587 = vmatprep.subr.mxu0 0.0
      %1588 = vmatpush1.msra.mxu0 0.0
      %1589 = vmatprep.subr.mxu0 0.0
      %1590 = vmatpush1.msra.mxu0 0.0
      %1591 = vmatprep.subr.mxu0 0.0
      %1592 = vmatpush1.msra.mxu0 0.0
      %1593 = vmatprep.subr.mxu0 0.0
      %1594 = vmatpush1.msra.mxu0 0.0
      %1595 = vmatprep.subr.mxu0 0.0
      %1596 = vmatpush1.msra.mxu0 0.0
      %1597 = vmatprep.subr.mxu0 0.0
      %1598 = vmatpush1.msra.mxu0 0.0
      %1599 = vmatprep.subr.mxu0 0.0
      %1600 = vmatpush1.msra.mxu0 %v462
      %1601 = vmatprep.subr.mxu0 0.0
      %1602 = vmatpush1.msra.mxu0 %v329
      %1603 = vmatprep.subr.mxu0 0.0
      %1604 = vmatpush1.msra.mxu0 %v328
      %1605 = vmatprep.subr.mxu0 0.0
      %1606 = vmatpush1.msra.mxu0 %v327
      %1607 = vmatprep.subr.mxu0 0.0
      %1608 = vmatpush1.msra.mxu0 %v326
      %1609 = vmatprep.subr.mxu0 0.0
      %1610 = vmatpush1.msra.mxu0 %v325
      %1611 = vmatprep.subr.mxu0 0.0
      %1612 = vmatpush1.msra.mxu0 %v324
      %1613 = vmatprep.subr.mxu0 0.0
      %1614 = vmatpush1.msra.mxu0 %v323
      %1615 = vmatprep.subr.mxu0 0.0
      %1616 = vmatpush1.msra.mxu0 %v322
      %1617 = vmatprep.subr.mxu0 0.0
      %1618 = vmatpush1.msra.mxu0 %v321
      %1619 = vmatprep.subr.mxu0 0.0
      %1620 = vmatpush2.msra.mxu0 0.0
      %1621 = vmatprep.subr.mxu0 0.0
      %1622 = vmatpush2.msra.mxu0 0.0
      %1623 = vmatprep.subr.mxu0 0.0
      %1624 = vmatpush2.msra.mxu0 0.0
      %1625 = vmatprep.subr.mxu0 0.0
      %1626 = vmatpush2.msra.mxu0 0.0
      %1627 = vmatprep.subr.mxu0 0.0
      %1628 = vmatpush2.msra.mxu0 0.0
      %1629 = vmatprep.subr.mxu0 0.0
      %1630 = vmatpush2.msra.mxu0 0.0
      %1631 = vmatprep.subr.mxu0 0.0
      %1632 = vmatpush2.msra.mxu0 0.0
      %1633 = vmatprep.subr.mxu0 0.0
      %1634 = vmatpush2.msra.mxu0 0.0
      %1635 = vmatprep.subr.mxu0 0.0
      %1636 = vmatpush2.msra.mxu0 0.0
      %1637 = vmatprep.subr.mxu0 0.0
      %1638 = vmatpush2.msra.mxu0 0.0
      %1639 = vmatprep.subr.mxu0 0.0
      %1640 = vmatpush2.msra.mxu0 0.0
      %1641 = vmatprep.subr.mxu0 0.0
      %1642 = vmatpush2.msra.mxu0 0.0
      %1643 = vmatprep.subr.mxu0 0.0
      %1644 = vmatpush2.msra.mxu0 0.0
      %1645 = vmatprep.subr.mxu0 0.0
      %1646 = vmatpush2.msra.mxu0 0.0
      %1647 = vmatprep.subr.mxu0 0.0
      %1648 = vmatpush2.msra.mxu0 0.0
      %1649 = vmatprep.subr.mxu0 0.0
      %1650 = vmatpush2.msra.mxu0 0.0
      %1651 = vmatprep.mubr.f32.mxu0 0.0
      %1652 = vmatmul.mubr.f32.gmra.mxu0 %v1492
      %v1653 = vpop.f32.mrf.mxu0
      %v1654 = vadd.f32 0.0, %v1653
      %v1655 = vpop.f32.mrf.mxu0
      %1656 = vmatprep.mubr.f32.mxu0 0.0
      %1657 = vmatmul.mubr.f32.gmra.mxu0 %v1495
      %v1658 = vpop.f32.mrf.mxu0
      %v1659 = vadd.f32 0.0, %v1658
      %v1660 = vpop.f32.mrf.mxu0
      %1661 = vmatprep.mubr.f32.mxu0 0.0
      %1662 = vmatmul.mubr.f32.gmra.mxu0 %v1498
      %v1663 = vpop.f32.mrf.mxu0
      %v1664 = vadd.f32 0.0, %v1663
      %v1665 = vpop.f32.mrf.mxu0
      %1666 = vmatprep.mubr.f32.mxu0 0.0
      %1667 = vmatmul.mubr.f32.gmra.mxu0 %v1501
      %v1668 = vpop.f32.mrf.mxu0
      %v1669 = vadd.f32 0.0, %v1668
      %v1670 = vpop.f32.mrf.mxu0
      %1671 = vmatprep.mubr.f32.mxu0 0.0
      %1672 = vmatmul.mubr.f32.gmra.mxu0 %v1504
      %v1673 = vpop.f32.mrf.mxu0
      %v1674 = vadd.f32 0.0, %v1673
      %v1675 = vpop.f32.mrf.mxu0
      %1676 = vmatprep.mubr.f32.mxu0 0.0
      %1677 = vmatmul.mubr.f32.gmra.mxu0 %v1507
      %v1678 = vpop.f32.mrf.mxu0
      %v1679 = vadd.f32 0.0, %v1678
      %v1680 = vpop.f32.mrf.mxu0
      %1681 = vmatprep.mubr.f32.mxu0 0.0
      %1682 = vmatmul.mubr.f32.gmra.mxu0 %v1510
      %v1683 = vpop.f32.mrf.mxu0
      %v1684 = vadd.f32 0.0, %v1683
      %v1685 = vpop.f32.mrf.mxu0
      %1686 = vmatprep.mubr.f32.mxu0 0.0
      %1687 = vmatmul.mubr.f32.gmra.mxu0 %v1513
      %v1688 = vpop.f32.mrf.mxu0
      %v1689 = vadd.f32 0.0, %v1688
      %v1690 = vpop.f32.mrf.mxu0
      %1691 = vmatprep.mubr.f32.mxu0 0.0
      %1692 = vmatmul.mubr.f32.gmra.mxu0 %v1516
      %v1693 = vpop.f32.mrf.mxu0
      %v1694 = vadd.f32 0.0, %v1693
      %v1695 = vpop.f32.mrf.mxu0
      %1696 = vmatprep.mubr.f32.mxu0 0.0
      %1697 = vmatmul.mubr.f32.gmra.mxu0 %v1519
      %v1698 = vpop.f32.mrf.mxu0
      %v1699 = vadd.f32 0.0, %v1698
      %v1700 = vpop.f32.mrf.mxu0
      %1701 = vmatprep.mubr.f32.mxu0 0.0
      %1702 = vmatmul.mubr.f32.gmra.mxu0 %v1522
      %v1703 = vpop.f32.mrf.mxu0
      %v1704 = vadd.f32 0.0, %v1703
      %v1705 = vpop.f32.mrf.mxu0
      %1706 = vmatprep.mubr.f32.mxu0 0.0
      %1707 = vmatmul.mubr.f32.gmra.mxu0 %v1525
      %v1708 = vpop.f32.mrf.mxu0
      %v1709 = vadd.f32 0.0, %v1708
      %v1710 = vpop.f32.mrf.mxu0
      %1711 = vmatprep.mubr.f32.mxu0 0.0
      %1712 = vmatmul.mubr.f32.gmra.mxu0 %v1528
      %v1713 = vpop.f32.mrf.mxu0
      %v1714 = vadd.f32 0.0, %v1713
      %v1715 = vpop.f32.mrf.mxu0
      %1716 = vmatprep.mubr.f32.mxu0 0.0
      %1717 = vmatmul.mubr.f32.gmra.mxu0 %v1531
      %v1718 = vpop.f32.mrf.mxu0
      %v1719 = vadd.f32 0.0, %v1718
      %v1720 = vpop.f32.mrf.mxu0
      %1721 = vmatprep.mubr.f32.mxu0 0.0
      %1722 = vmatmul.mubr.f32.gmra.mxu0 %v1534
      %v1723 = vpop.f32.mrf.mxu0
      %v1724 = vadd.f32 0.0, %v1723
      %v1725 = vpop.f32.mrf.mxu0
      %1726 = vmatprep.mubr.f32.mxu0 0.0
      %1727 = vmatmul.mubr.f32.gmra.mxu0 %v1537
      %v1728 = vpop.f32.mrf.mxu0
      %v1729 = vadd.f32 0.0, %v1728
      %v1730 = vpop.f32.mrf.mxu0
      %1731 = vmatprep.mubr.f32.mxu0 0.0
      %1732 = vmatmul.mubr.f32.gmra.mxu0 %v1540
      %v1733 = vpop.f32.mrf.mxu0
      %v1734 = vadd.f32 0.0, %v1733
      %v1735 = vpop.f32.mrf.mxu0
      %1736 = vmatprep.mubr.f32.mxu0 0.0
      %1737 = vmatmul.mubr.f32.gmra.mxu0 %v1543
      %v1738 = vpop.f32.mrf.mxu0
      %v1739 = vadd.f32 0.0, %v1738
      %v1740 = vpop.f32.mrf.mxu0
      %1741 = vmatprep.mubr.f32.mxu0 0.0
      %1742 = vmatmul.mubr.f32.gmra.mxu0 %v1546
      %v1743 = vpop.f32.mrf.mxu0
      %v1744 = vadd.f32 0.0, %v1743
      %v1745 = vpop.f32.mrf.mxu0
      %1746 = vmatprep.mubr.f32.mxu0 0.0
      %1747 = vmatmul.mubr.f32.gmra.mxu0 %v1549
      %v1748 = vpop.f32.mrf.mxu0
      %v1749 = vadd.f32 0.0, %v1748
      %v1750 = vpop.f32.mrf.mxu0
      %1751 = vmatprep.mubr.f32.mxu0 0.0
      %1752 = vmatmul.mubr.f32.gmra.mxu0 %v1552
      %v1753 = vpop.f32.mrf.mxu0
      %v1754 = vadd.f32 0.0, %v1753
      %v1755 = vpop.f32.mrf.mxu0
      %1756 = vmatprep.mubr.f32.mxu0 0.0
      %1757 = vmatmul.mubr.f32.gmra.mxu0 %v1555
      %v1758 = vpop.f32.mrf.mxu0
      %v1759 = vadd.f32 0.0, %v1758
      %v1760 = vpop.f32.mrf.mxu0
      %1761 = vmatprep.mubr.f32.mxu0 0.0
      %1762 = vmatmul.mubr.f32.gmra.mxu0 %v1558
      %v1763 = vpop.f32.mrf.mxu0
      %v1764 = vadd.f32 0.0, %v1763
      %v1765 = vpop.f32.mrf.mxu0
      %1766 = vmatprep.mubr.f32.mxu0 0.0
      %1767 = vmatmul.mubr.f32.gmra.mxu0 %v1561
      %v1768 = vpop.f32.mrf.mxu0
      %v1769 = vadd.f32 0.0, %v1768
      %v1770 = vpop.f32.mrf.mxu0
      %1771 = vmatprep.mubr.f32.mxu0 0.0
      %1772 = vmatmul.mubr.f32.gmra.mxu0 %v1564
      %v1773 = vpop.f32.mrf.mxu0
      %v1774 = vadd.f32 0.0, %v1773
      %v1775 = vpop.f32.mrf.mxu0
      %1776 = vmatprep.mubr.f32.mxu0 0.0
      %1777 = vmatmul.mubr.f32.gmra.mxu0 %v1567
      %v1778 = vpop.f32.mrf.mxu0
      %v1779 = vadd.f32 0.0, %v1778
      %v1780 = vpop.f32.mrf.mxu0
      %1781 = vmatprep.mubr.f32.mxu0 0.0
      %1782 = vmatmul.mubr.f32.gmra.mxu0 %v1570
      %v1783 = vpop.f32.mrf.mxu0
      %v1784 = vadd.f32 0.0, %v1783
      %v1785 = vpop.f32.mrf.mxu0
      %1786 = vmatprep.mubr.f32.mxu0 0.0
      %1787 = vmatmul.mubr.f32.gmra.mxu0 %v1573
      %v1788 = vpop.f32.mrf.mxu0
      %v1789 = vadd.f32 0.0, %v1788
      %v1790 = vpop.f32.mrf.mxu0
      %1791 = vmatprep.mubr.f32.mxu0 0.0
      %1792 = vmatmul.mubr.f32.gmra.mxu0 %v1576
      %v1793 = vpop.f32.mrf.mxu0
      %v1794 = vadd.f32 0.0, %v1793
      %v1795 = vpop.f32.mrf.mxu0
      %1796 = vmatprep.mubr.f32.mxu0 0.0
      %1797 = vmatmul.mubr.f32.gmra.mxu0 %v1579
      %v1798 = vpop.f32.mrf.mxu0
      %v1799 = vadd.f32 0.0, %v1798
      %v1800 = vpop.f32.mrf.mxu0
      %1801 = vmatprep.mubr.f32.mxu0 0.0
      %1802 = vmatmul.mubr.f32.gmra.mxu0 %v1582
      %v1803 = vpop.f32.mrf.mxu0
      %v1804 = vadd.f32 0.0, %v1803
      %v1805 = vpop.f32.mrf.mxu0
      %1806 = vmatprep.mubr.f32.mxu0 0.0
      %1807 = vmatmul.mubr.f32.gmra.mxu0 %v1585
      %v1808 = vpop.f32.mrf.mxu0
      %v1809 = vadd.f32 0.0, %v1808
      %v1810 = vpop.f32.mrf.mxu0
      %1811 = vdwg.mxu0
      %v1812 = vmax.f32 %v1427, %v1654
      %v1813 = vmax.f32 %v1428, %v1659
      %v1814 = vmax.f32 %v1429, %v1664
      %v1815 = vmax.f32 %v1430, %v1669
      %v1816 = vmax.f32 %v1431, %v1674
      %v1817 = vmax.f32 %v1432, %v1679
      %v1818 = vmax.f32 %v1433, %v1684
      %v1819 = vmax.f32 %v1434, %v1689
      %v1820 = vmax.f32 %v1435, %v1694
      %v1821 = vmax.f32 %v1436, %v1699
      %v1822 = vmax.f32 %v1437, %v1704
      %v1823 = vmax.f32 %v1438, %v1709
      %v1824 = vmax.f32 %v1439, %v1714
      %v1825 = vmax.f32 %v1440, %v1719
      %v1826 = vmax.f32 %v1441, %v1724
      %v1827 = vmax.f32 %v1442, %v1729
      %v1828 = vmax.f32 %v1443, %v1734
      %v1829 = vmax.f32 %v1444, %v1739
      %v1830 = vmax.f32 %v1445, %v1744
      %v1831 = vmax.f32 %v1446, %v1749
      %v1832 = vmax.f32 %v1447, %v1754
      %v1833 = vmax.f32 %v1448, %v1759
      %v1834 = vmax.f32 %v1449, %v1764
      %v1835 = vmax.f32 %v1450, %v1769
      %v1836 = vmax.f32 %v1451, %v1774
      %v1837 = vmax.f32 %v1452, %v1779
      %v1838 = vmax.f32 %v1453, %v1784
      %v1839 = vmax.f32 %v1454, %v1789
      %v1840 = vmax.f32 %v1455, %v1794
      %v1841 = vmax.f32 %v1456, %v1799
      %v1842 = vmax.f32 %v1457, %v1804
      %v1843 = vmax.f32 %v1458, %v1809
      %v1844 = vld [vmem:[%s5] sm:$0x1]
      %v1846 = vlaneseq
      %v1847 = vshrl.u32 %v1846, 7
      %v1848 = vsub.s32 0, %v1847
      %v1849 = vrot.slane %v1844, %v1848
      %v1851 = vadd.f32 %v1812, %v1849
      %v1852 = vadd.f32 %v1813, %v1849
      %v1853 = vadd.f32 %v1814, %v1849
      %v1854 = vadd.f32 %v1815, %v1849
      %v1855 = vadd.f32 %v1816, %v1849
      %v1856 = vadd.f32 %v1817, %v1849
      %v1857 = vadd.f32 %v1818, %v1849
      %v1858 = vadd.f32 %v1819, %v1849
      %v1859 = vadd.f32 %v1820, %v1849
      %v1860 = vadd.f32 %v1821, %v1849
      %v1861 = vadd.f32 %v1822, %v1849
      %v1862 = vadd.f32 %v1823, %v1849
      %v1863 = vadd.f32 %v1824, %v1849
      %v1864 = vadd.f32 %v1825, %v1849
      %v1865 = vadd.f32 %v1826, %v1849
      %v1866 = vadd.f32 %v1827, %v1849
      %v1867 = vadd.f32 %v1828, %v1849
      %v1868 = vadd.f32 %v1829, %v1849
      %v1869 = vadd.f32 %v1830, %v1849
      %v1870 = vadd.f32 %v1831, %v1849
      %v1871 = vadd.f32 %v1832, %v1849
      %v1872 = vadd.f32 %v1833, %v1849
      %v1873 = vadd.f32 %v1834, %v1849
      %v1874 = vadd.f32 %v1835, %v1849
      %v1875 = vadd.f32 %v1836, %v1849
      %v1876 = vadd.f32 %v1837, %v1849
      %v1877 = vadd.f32 %v1838, %v1849
      %v1878 = vadd.f32 %v1839, %v1849
      %v1879 = vadd.f32 %v1840, %v1849
      %v1880 = vadd.f32 %v1841, %v1849
      %v1881 = vadd.f32 %v1842, %v1849
      %v1882 = vadd.f32 %v1843, %v1849
      %v1883 = vmax.f32 %v1851, 0.0
      %v1884 = vmax.f32 %v1852, 0.0
      %v1885 = vmax.f32 %v1853, 0.0
      %v1886 = vmax.f32 %v1854, 0.0
      %v1887 = vmax.f32 %v1855, 0.0
      %v1888 = vmax.f32 %v1856, 0.0
      %v1889 = vmax.f32 %v1857, 0.0
      %v1890 = vmax.f32 %v1858, 0.0
      %v1891 = vmax.f32 %v1859, 0.0
      %v1892 = vmax.f32 %v1860, 0.0
      %v1893 = vmax.f32 %v1861, 0.0
      %v1894 = vmax.f32 %v1862, 0.0
      %v1895 = vmax.f32 %v1863, 0.0
      %v1896 = vmax.f32 %v1864, 0.0
      %v1897 = vmax.f32 %v1865, 0.0
      %v1898 = vmax.f32 %v1866, 0.0
      %v1899 = vmax.f32 %v1867, 0.0
      %v1900 = vmax.f32 %v1868, 0.0
      %v1901 = vmax.f32 %v1869, 0.0
      %v1902 = vmax.f32 %v1870, 0.0
      %v1903 = vmax.f32 %v1871, 0.0
      %v1904 = vmax.f32 %v1872, 0.0
      %v1905 = vmax.f32 %v1873, 0.0
      %v1906 = vmax.f32 %v1874, 0.0
      %v1907 = vmax.f32 %v1875, 0.0
      %v1908 = vmax.f32 %v1876, 0.0
      %v1909 = vmax.f32 %v1877, 0.0
      %v1910 = vmax.f32 %v1878, 0.0
      %v1911 = vmax.f32 %v1879, 0.0
      %v1912 = vmax.f32 %v1880, 0.0
      %v1913 = vmax.f32 %v1881, 0.0
      %v1914 = vmax.f32 %v1882, 0.0
      %1915 = vst [vmem:[%s319] sm:$0xff] %v1883
      %1916 = vst [vmem:[%s319 + $0x8] sm:$0xff] %v1884
      %1917 = vst [vmem:[%s319 + $0x10] sm:$0xff] %v1885
      %1918 = vst [vmem:[%s319 + $0x18] sm:$0xff] %v1886
      %1919 = vst [vmem:[%s319 + $0x20] sm:$0xff] %v1887
      %1920 = vst [vmem:[%s319 + $0x28] sm:$0xff] %v1888
      %1921 = vst [vmem:[%s319 + $0x30] sm:$0xff] %v1889
      %1922 = vst [vmem:[%s319 + $0x38] sm:$0xff] %v1890
      %1923 = vst [vmem:[%s319 + $0x40] sm:$0xff] %v1891
      %1924 = vst [vmem:[%s319 + $0x48] sm:$0xff] %v1892
      %1925 = vst [vmem:[%s319 + $0x50] sm:$0xff] %v1893
      %1926 = vst [vmem:[%s319 + $0x58] sm:$0xff] %v1894
      %1927 = vst [vmem:[%s319 + $0x60] sm:$0xff] %v1895
      %1928 = vst [vmem:[%s319 + $0x68] sm:$0xff] %v1896
      %1929 = vst [vmem:[%s319 + $0x70] sm:$0xff] %v1897
      %1930 = vst [vmem:[%s319 + $0x78] sm:$0xff] %v1898
      %1931 = vst [vmem:[%s319 + $0x80] sm:$0xff] %v1899
      %1932 = vst [vmem:[%s319 + $0x88] sm:$0xff] %v1900
      %1933 = vst [vmem:[%s319 + $0x90] sm:$0xff] %v1901
      %1934 = vst [vmem:[%s319 + $0x98] sm:$0xff] %v1902
      %1935 = vst [vmem:[%s319 + $0xa0] sm:$0xff] %v1903
      %1936 = vst [vmem:[%s319 + $0xa8] sm:$0xff] %v1904
      %1937 = vst [vmem:[%s319 + $0xb0] sm:$0xff] %v1905
      %1938 = vst [vmem:[%s319 + $0xb8] sm:$0xff] %v1906
      %1939 = vst [vmem:[%s319 + $0xc0] sm:$0xff] %v1907
      %1940 = vst [vmem:[%s319 + $0xc8] sm:$0xff] %v1908
      %1941 = vst [vmem:[%s319 + $0xd0] sm:$0xff] %v1909
      %1942 = vst [vmem:[%s319 + $0xd8] sm:$0xff] %v1910
      %1943 = vst [vmem:[%s319 + $0xe0] sm:$0xff] %v1911
      %1944 = vst [vmem:[%s319 + $0xe8] sm:$0xff] %v1912
      %1945 = vst [vmem:[%s319 + $0xf0] sm:$0xff] %v1913
      %1946 = vst [vmem:[%s319 + $0xf8] sm:$0xff] %v1914
      %s1947 = smul.u32 32, %s17
      %p1948 = scmp.lt.s32.totalorder %s1947, 63
      %s1949 = scalar_select %p1948, %s1947, 63
      %s1950 = smul.addr %s1949, 8
      %s1951 = scalar_lea.vmem %s6, %s1950
      // Predicated region
      $region45: #{lenet_forward.3} parent=43 // pred_check
        %p1952 = pneg %p181
      $region46: #{lenet_forward.3} parent=43 // pred_check_branch
        %1954 = sbr.rel (%p1952) target = $region48
      $region47: #{lenet_forward.3} parent=43 // pred_region
        %s1955 = smul.u32 32, %s17
      $region48: #{lenet_forward.3} parent=43 // pred_fallthru
        _
    $region44: #{lenet_forward.3} parent=5 // pred_fallthru
      _
    %p1956 = scmp.le.s32.totalorder 2, %s12
    // Predicated region
    $region49: #{lenet_forward.3} parent=5 // pred_check
      %p1957 = pneg %p1956
    $region50: #{lenet_forward.3} parent=5 // pred_check_branch
      %1959 = sbr.rel (%p1957) target = $region52
    $region51: #{lenet_forward.3} parent=5 // pred_region
      %s1960 = ssub.s32 %s12, 2
      // Predicated region
      $region53: #{lenet_forward.3} parent=51 // pred_check
        %p1961 = pneg %p187
      $region54: #{lenet_forward.3} parent=51 // pred_check_branch
        %1963 = sbr.rel (%p1961) target = $region56
      $region55: #{lenet_forward.3} parent=51 // pred_region
        %s1964 = smul.u32 32, %s18
        %p1965 = scmp.lt.s32.totalorder %s1964, 63
        %s1966 = scalar_select %p1965, %s1964, 63
        %s1967 = smul.addr %s1966, 8
        %s1968 = scalar_lea.vmem %s6, %s1967
      $region56: #{lenet_forward.3} parent=51 // pred_fallthru
        _
    $region52: #{lenet_forward.3} parent=5 // pred_fallthru
      _
  $region6: #{lenet_forward.3} parent=0 // loop_footer
    %s16 = sadd.s32 1, %s12
  $region7: #{lenet_forward.3} parent=0 // loop_footer_branch
    %11 = sbr.rel target = $region3
  $region8: #{lenet_forward.3} parent=0 // loop_exit
    _

// kernel: lenet_forward.4
$region0: #{lenet_forward.4}
  #allocation0 [shape = 'u32[]', space=smem, size = 0x4, offset = 0x4, fixed_abs, tag = 'smem constant byte address 0x4 - core index']
  #allocation1 [shape = 'u32[144,128]{1,0:T(1,128)}', space=vmem, size = 0x12000, scoped, tag = 'internal scratch']
  %s0 = inlined_call_operand.vmem [shape: f32[50,150], index: 0, kind: input, shape index: {}]
  %s1 = inlined_call_operand.vmem [shape: f32[50,150], index: 1, kind: input, shape index: {}]
  %s2 = inlined_call_operand.vmem [shape: f32[50,150], index: 2, kind: input, shape index: {}]
  %s3 = inlined_call_operand.vmem [shape: f32[50,150], index: 3, kind: input, shape index: {}]
  %s4 = inlined_call_operand.vmem [shape: f32[150,128], index: 4, kind: input, shape index: {}]
  %s5 = inlined_call_operand.vmem [shape: f32[1,128], index: 5, kind: input, shape index: {}]
  %s6 = inlined_call_operand.vmem [shape: f32[50,128], index: 6, kind: output, shape index: {}]
  %s7 = sld [smem:[#allocation0]]
  $region34: #{lenet_forward.4} parent=0
    _
  %s9 = ssub.s32 1, %s7
  %s10 = scalar_select 0, %s9, %s7
  // Predicated region
  $region2: #{lenet_forward.4} parent=0 // pred_check
    _
  $region3: #{lenet_forward.4} parent=0 // pred_check_branch
    %12 = sbr.rel (0) target = $region5
  $region4: #{lenet_forward.4} parent=0 // pred_region
    _
  $region5: #{lenet_forward.4} parent=0 // pred_fallthru
    _
  // Predicated region
  $region6: #{lenet_forward.4} parent=0 // pred_check
    _
  $region7: #{lenet_forward.4} parent=0 // pred_check_branch
    %14 = sbr.rel (0) target = $region9
  $region8: #{lenet_forward.4} parent=0 // pred_region
    _
  $region9: #{lenet_forward.4} parent=0 // pred_fallthru
    _
  // Predicated region
  $region10: #{lenet_forward.4} parent=0 // pred_check
    _
  $region11: #{lenet_forward.4} parent=0 // pred_check_branch
    %16 = sbr.rel (0) target = $region13
  $region12: #{lenet_forward.4} parent=0 // pred_region
    _
  $region13: #{lenet_forward.4} parent=0 // pred_fallthru
    _
  // Predicated region
  $region14: #{lenet_forward.4} parent=0 // pred_check
    _
  $region15: #{lenet_forward.4} parent=0 // pred_check_branch
    %18 = sbr.rel (0) target = $region17
  $region16: #{lenet_forward.4} parent=0 // pred_region
    _
  $region17: #{lenet_forward.4} parent=0 // pred_fallthru
    _
  // Predicated region
  $region18: #{lenet_forward.4} parent=0 // pred_check
    _
  $region19: #{lenet_forward.4} parent=0 // pred_check_branch
    %20 = sbr.rel (0) target = $region21
  $region20: #{lenet_forward.4} parent=0 // pred_region
    _
  $region21: #{lenet_forward.4} parent=0 // pred_fallthru
    _
  // Predicated region
  $region22: #{lenet_forward.4} parent=0 // pred_check
    _
  $region23: #{lenet_forward.4} parent=0 // pred_check_branch
    %22 = sbr.rel (0) target = $region25
  $region24: #{lenet_forward.4} parent=0 // pred_region
    _
  $region25: #{lenet_forward.4} parent=0 // pred_fallthru
    _
  %v23 = vld [vmem:[%s4] sm:$0xff]
  %v24 = vld [vmem:[%s4 + $0x8] sm:$0xff]
  %v25 = vld [vmem:[%s4 + $0x10] sm:$0xff]
  %v26 = vld [vmem:[%s4 + $0x18] sm:$0xff]
  %v27 = vld [vmem:[%s4 + $0x20] sm:$0xff]
  %v28 = vld [vmem:[%s4 + $0x28] sm:$0xff]
  %v29 = vld [vmem:[%s4 + $0x30] sm:$0xff]
  %v30 = vld [vmem:[%s4 + $0x38] sm:$0xff]
  %v31 = vld [vmem:[%s4 + $0x40] sm:$0xff]
  %v32 = vld [vmem:[%s4 + $0x48] sm:$0xff]
  %v33 = vld [vmem:[%s4 + $0x50] sm:$0xff]
  %v34 = vld [vmem:[%s4 + $0x58] sm:$0xff]
  %v35 = vld [vmem:[%s4 + $0x60] sm:$0xff]
  %v36 = vld [vmem:[%s4 + $0x68] sm:$0xff]
  %v37 = vld [vmem:[%s4 + $0x70] sm:$0xff]
  %v38 = vld [vmem:[%s4 + $0x78] sm:$0xff]
  %v39 = vld [vmem:[%s4 + $0x80] sm:$0xff]
  %v40 = vld [vmem:[%s4 + $0x88] sm:$0xff]
  %v41 = vld [vmem:[%s4 + $0x90] sm:$0x3f]
  %v42 = vld [vmem:[%s0] sm:$0xff]
  %v43 = vld [vmem:[%s0 + $0x8] sm:$0xff]
  %v44 = vld [vmem:[%s0 + $0x10] sm:$0xff]
  %v45 = vld [vmem:[%s0 + $0x18] sm:$0xff]
  %v46 = vld [vmem:[%s0 + $0x20] sm:$0xff]
  %v47 = vld [vmem:[%s0 + $0x28] sm:$0xff]
  %v48 = vld [vmem:[%s0 + $0x30] sm:$0xff]
  %v49 = vld [vmem:[%s0 + $0x38] sm:$0xff]
  %v50 = vld [vmem:[%s0 + $0x40] sm:$0xff]
  %v51 = vld [vmem:[%s0 + $0x48] sm:$0xff]
  %v52 = vld [vmem:[%s0 + $0x50] sm:$0xff]
  %v53 = vld [vmem:[%s0 + $0x58] sm:$0xff]
  %v54 = vld [vmem:[%s0 + $0x60] sm:$0x3]
  %v55 = vld [vmem:[%s0 + $0x68] sm:$0x3]
  %vm56 = vcmask 179200
  %v58 = vsel %vm56, %v43, 0
  %v61 = vsel %vm56, %v45, 0
  %v64 = vsel %vm56, %v47, 0
  %v67 = vsel %vm56, %v49, 0
  %v70 = vsel %vm56, %v51, 0
  %v73 = vsel %vm56, %v53, 0
  %v76 = vsel %vm56, %v55, 0
  %vm78 = vcmask 1045504
  %v80 = vsel %vm78, %v41, 0
  %82 = vmatprep.subr.mxu0 0.0
  %83 = vmatpush1.msra.mxu0 %v38
  %84 = vmatprep.subr.mxu0 0.0
  %85 = vmatpush1.msra.mxu0 %v37
  %86 = vmatprep.subr.mxu0 0.0
  %87 = vmatpush1.msra.mxu0 %v36
  %88 = vmatprep.subr.mxu0 0.0
  %89 = vmatpush1.msra.mxu0 %v35
  %90 = vmatprep.subr.mxu0 0.0
  %91 = vmatpush1.msra.mxu0 %v34
  %92 = vmatprep.subr.mxu0 0.0
  %93 = vmatpush1.msra.mxu0 %v33
  %94 = vmatprep.subr.mxu0 0.0
  %95 = vmatpush1.msra.mxu0 %v32
  %96 = vmatprep.subr.mxu0 0.0
  %97 = vmatpush1.msra.mxu0 %v31
  %98 = vmatprep.subr.mxu0 0.0
  %99 = vmatpush1.msra.mxu0 %v30
  %100 = vmatprep.subr.mxu0 0.0
  %101 = vmatpush1.msra.mxu0 %v29
  %102 = vmatprep.subr.mxu0 0.0
  %103 = vmatpush1.msra.mxu0 %v28
  %104 = vmatprep.subr.mxu0 0.0
  %105 = vmatpush1.msra.mxu0 %v27
  %106 = vmatprep.subr.mxu0 0.0
  %107 = vmatpush1.msra.mxu0 %v26
  %108 = vmatprep.subr.mxu0 0.0
  %109 = vmatpush1.msra.mxu0 %v25
  %110 = vmatprep.subr.mxu0 0.0
  %111 = vmatpush1.msra.mxu0 %v24
  %112 = vmatprep.subr.mxu0 0.0
  %113 = vmatpush1.msra.mxu0 %v23
  %114 = vmatprep.subr.mxu0 0.0
  %115 = vmatpush2.msra.mxu0 0.0
  %116 = vmatprep.subr.mxu0 0.0
  %117 = vmatpush2.msra.mxu0 0.0
  %118 = vmatprep.subr.mxu0 0.0
  %119 = vmatpush2.msra.mxu0 0.0
  %120 = vmatprep.subr.mxu0 0.0
  %121 = vmatpush2.msra.mxu0 0.0
  %122 = vmatprep.subr.mxu0 0.0
  %123 = vmatpush2.msra.mxu0 0.0
  %124 = vmatprep.subr.mxu0 0.0
  %125 = vmatpush2.msra.mxu0 0.0
  %126 = vmatprep.subr.mxu0 0.0
  %127 = vmatpush2.msra.mxu0 0.0
  %128 = vmatprep.subr.mxu0 0.0
  %129 = vmatpush2.msra.mxu0 0.0
  %130 = vmatprep.subr.mxu0 0.0
  %131 = vmatpush2.msra.mxu0 0.0
  %132 = vmatprep.subr.mxu0 0.0
  %133 = vmatpush2.msra.mxu0 0.0
  %134 = vmatprep.subr.mxu0 0.0
  %135 = vmatpush2.msra.mxu0 0.0
  %136 = vmatprep.subr.mxu0 0.0
  %137 = vmatpush2.msra.mxu0 0.0
  %138 = vmatprep.subr.mxu0 0.0
  %139 = vmatpush2.msra.mxu0 0.0
  %140 = vmatprep.subr.mxu0 0.0
  %141 = vmatpush2.msra.mxu0 %v80
  %142 = vmatprep.subr.mxu0 0.0
  %143 = vmatpush2.msra.mxu0 %v40
  %144 = vmatprep.subr.mxu0 0.0
  %145 = vmatpush2.msra.mxu0 %v39
  %146 = vmatprep.mubr.f32.mxu0 %v58
  %147 = vmatmul.mubr.f32.gmra.mxu0 %v42
  %v148 = vpop.f32.mrf.mxu0
  %v149 = vadd.f32 0.0, %v148
  %v150 = vpop.f32.mrf.mxu0
  %151 = vmatprep.mubr.f32.mxu0 %v61
  %152 = vmatmul.mubr.f32.gmra.mxu0 %v44
  %v153 = vpop.f32.mrf.mxu0
  %v154 = vadd.f32 0.0, %v153
  %v155 = vpop.f32.mrf.mxu0
  %156 = vmatprep.mubr.f32.mxu0 %v64
  %157 = vmatmul.mubr.f32.gmra.mxu0 %v46
  %v158 = vpop.f32.mrf.mxu0
  %v159 = vadd.f32 0.0, %v158
  %v160 = vpop.f32.mrf.mxu0
  %161 = vmatprep.mubr.f32.mxu0 %v67
  %162 = vmatmul.mubr.f32.gmra.mxu0 %v48
  %v163 = vpop.f32.mrf.mxu0
  %v164 = vadd.f32 0.0, %v163
  %v165 = vpop.f32.mrf.mxu0
  %166 = vmatprep.mubr.f32.mxu0 %v70
  %167 = vmatmul.mubr.f32.gmra.mxu0 %v50
  %v168 = vpop.f32.mrf.mxu0
  %v169 = vadd.f32 0.0, %v168
  %v170 = vpop.f32.mrf.mxu0
  %171 = vmatprep.mubr.f32.mxu0 %v73
  %172 = vmatmul.mubr.f32.gmra.mxu0 %v52
  %v173 = vpop.f32.mrf.mxu0
  %v174 = vadd.f32 0.0, %v173
  %v175 = vpop.f32.mrf.mxu0
  %176 = vmatprep.mubr.f32.mxu0 %v76
  %177 = vmatmul.mubr.f32.gmra.mxu0 %v54
  %v178 = vpop.f32.mrf.mxu0
  %v179 = vadd.f32 0.0, %v178
  %v180 = vpop.f32.mrf.mxu0
  %181 = vdwg.mxu0
  %v182 = vld [vmem:[%s1] sm:$0xff]
  %v183 = vld [vmem:[%s1 + $0x8] sm:$0xff]
  %v184 = vld [vmem:[%s1 + $0x10] sm:$0xff]
  %v185 = vld [vmem:[%s1 + $0x18] sm:$0xff]
  %v186 = vld [vmem:[%s1 + $0x20] sm:$0xff]
  %v187 = vld [vmem:[%s1 + $0x28] sm:$0xff]
  %v188 = vld [vmem:[%s1 + $0x30] sm:$0xff]
  %v189 = vld [vmem:[%s1 + $0x38] sm:$0xff]
  %v190 = vld [vmem:[%s1 + $0x40] sm:$0xff]
  %v191 = vld [vmem:[%s1 + $0x48] sm:$0xff]
  %v192 = vld [vmem:[%s1 + $0x50] sm:$0xff]
  %v193 = vld [vmem:[%s1 + $0x58] sm:$0xff]
  %v194 = vld [vmem:[%s1 + $0x60] sm:$0x3]
  %v195 = vld [vmem:[%s1 + $0x68] sm:$0x3]
  %v197 = vsel %vm56, %v183, 0
  %v200 = vsel %vm56, %v185, 0
  %v203 = vsel %vm56, %v187, 0
  %v206 = vsel %vm56, %v189, 0
  %v209 = vsel %vm56, %v191, 0
  %v212 = vsel %vm56, %v193, 0
  %v215 = vsel %vm56, %v195, 0
  %217 = vmatprep.subr.mxu0 0.0
  %218 = vmatpush1.msra.mxu0 %v38
  %219 = vmatprep.subr.mxu0 0.0
  %220 = vmatpush1.msra.mxu0 %v37
  %221 = vmatprep.subr.mxu0 0.0
  %222 = vmatpush1.msra.mxu0 %v36
  %223 = vmatprep.subr.mxu0 0.0
  %224 = vmatpush1.msra.mxu0 %v35
  %225 = vmatprep.subr.mxu0 0.0
  %226 = vmatpush1.msra.mxu0 %v34
  %227 = vmatprep.subr.mxu0 0.0
  %228 = vmatpush1.msra.mxu0 %v33
  %229 = vmatprep.subr.mxu0 0.0
  %230 = vmatpush1.msra.mxu0 %v32
  %231 = vmatprep.subr.mxu0 0.0
  %232 = vmatpush1.msra.mxu0 %v31
  %233 = vmatprep.subr.mxu0 0.0
  %234 = vmatpush1.msra.mxu0 %v30
  %235 = vmatprep.subr.mxu0 0.0
  %236 = vmatpush1.msra.mxu0 %v29
  %237 = vmatprep.subr.mxu0 0.0
  %238 = vmatpush1.msra.mxu0 %v28
  %239 = vmatprep.subr.mxu0 0.0
  %240 = vmatpush1.msra.mxu0 %v27
  %241 = vmatprep.subr.mxu0 0.0
  %242 = vmatpush1.msra.mxu0 %v26
  %243 = vmatprep.subr.mxu0 0.0
  %244 = vmatpush1.msra.mxu0 %v25
  %245 = vmatprep.subr.mxu0 0.0
  %246 = vmatpush1.msra.mxu0 %v24
  %247 = vmatprep.subr.mxu0 0.0
  %248 = vmatpush1.msra.mxu0 %v23
  %249 = vmatprep.subr.mxu0 0.0
  %250 = vmatpush2.msra.mxu0 0.0
  %251 = vmatprep.subr.mxu0 0.0
  %252 = vmatpush2.msra.mxu0 0.0
  %253 = vmatprep.subr.mxu0 0.0
  %254 = vmatpush2.msra.mxu0 0.0
  %255 = vmatprep.subr.mxu0 0.0
  %256 = vmatpush2.msra.mxu0 0.0
  %257 = vmatprep.subr.mxu0 0.0
  %258 = vmatpush2.msra.mxu0 0.0
  %259 = vmatprep.subr.mxu0 0.0
  %260 = vmatpush2.msra.mxu0 0.0
  %261 = vmatprep.subr.mxu0 0.0
  %262 = vmatpush2.msra.mxu0 0.0
  %263 = vmatprep.subr.mxu0 0.0
  %264 = vmatpush2.msra.mxu0 0.0
  %265 = vmatprep.subr.mxu0 0.0
  %266 = vmatpush2.msra.mxu0 0.0
  %267 = vmatprep.subr.mxu0 0.0
  %268 = vmatpush2.msra.mxu0 0.0
  %269 = vmatprep.subr.mxu0 0.0
  %270 = vmatpush2.msra.mxu0 0.0
  %271 = vmatprep.subr.mxu0 0.0
  %272 = vmatpush2.msra.mxu0 0.0
  %273 = vmatprep.subr.mxu0 0.0
  %274 = vmatpush2.msra.mxu0 0.0
  %275 = vmatprep.subr.mxu0 0.0
  %276 = vmatpush2.msra.mxu0 %v80
  %277 = vmatprep.subr.mxu0 0.0
  %278 = vmatpush2.msra.mxu0 %v40
  %279 = vmatprep.subr.mxu0 0.0
  %280 = vmatpush2.msra.mxu0 %v39
  %281 = vmatprep.mubr.f32.mxu0 %v197
  %282 = vmatmul.mubr.f32.gmra.mxu0 %v182
  %v283 = vpop.f32.mrf.mxu0
  %v284 = vadd.f32 0.0, %v283
  %v285 = vpop.f32.mrf.mxu0
  %286 = vmatprep.mubr.f32.mxu0 %v200
  %287 = vmatmul.mubr.f32.gmra.mxu0 %v184
  %v288 = vpop.f32.mrf.mxu0
  %v289 = vadd.f32 0.0, %v288
  %v290 = vpop.f32.mrf.mxu0
  %291 = vmatprep.mubr.f32.mxu0 %v203
  %292 = vmatmul.mubr.f32.gmra.mxu0 %v186
  %v293 = vpop.f32.mrf.mxu0
  %v294 = vadd.f32 0.0, %v293
  %v295 = vpop.f32.mrf.mxu0
  %296 = vmatprep.mubr.f32.mxu0 %v206
  %297 = vmatmul.mubr.f32.gmra.mxu0 %v188
  %v298 = vpop.f32.mrf.mxu0
  %v299 = vadd.f32 0.0, %v298
  %v300 = vpop.f32.mrf.mxu0
  %301 = vmatprep.mubr.f32.mxu0 %v209
  %302 = vmatmul.mubr.f32.gmra.mxu0 %v190
  %v303 = vpop.f32.mrf.mxu0
  %v304 = vadd.f32 0.0, %v303
  %v305 = vpop.f32.mrf.mxu0
  %306 = vmatprep.mubr.f32.mxu0 %v212
  %307 = vmatmul.mubr.f32.gmra.mxu0 %v192
  %v308 = vpop.f32.mrf.mxu0
  %v309 = vadd.f32 0.0, %v308
  %v310 = vpop.f32.mrf.mxu0
  %311 = vmatprep.mubr.f32.mxu0 %v215
  %312 = vmatmul.mubr.f32.gmra.mxu0 %v194
  %v313 = vpop.f32.mrf.mxu0
  %v314 = vadd.f32 0.0, %v313
  %v315 = vpop.f32.mrf.mxu0
  %316 = vdwg.mxu0
  %v317 = vmax.f32 %v149, %v284
  %v318 = vmax.f32 %v154, %v289
  %v319 = vmax.f32 %v159, %v294
  %v320 = vmax.f32 %v164, %v299
  %v321 = vmax.f32 %v169, %v304
  %v322 = vmax.f32 %v174, %v309
  %v323 = vmax.f32 %v179, %v314
  %v324 = vld [vmem:[%s2] sm:$0xff]
  %v325 = vld [vmem:[%s2 + $0x8] sm:$0xff]
  %v326 = vld [vmem:[%s2 + $0x10] sm:$0xff]
  %v327 = vld [vmem:[%s2 + $0x18] sm:$0xff]
  %v328 = vld [vmem:[%s2 + $0x20] sm:$0xff]
  %v329 = vld [vmem:[%s2 + $0x28] sm:$0xff]
  %v330 = vld [vmem:[%s2 + $0x30] sm:$0xff]
  %v331 = vld [vmem:[%s2 + $0x38] sm:$0xff]
  %v332 = vld [vmem:[%s2 + $0x40] sm:$0xff]
  %v333 = vld [vmem:[%s2 + $0x48] sm:$0xff]
  %v334 = vld [vmem:[%s2 + $0x50] sm:$0xff]
  %v335 = vld [vmem:[%s2 + $0x58] sm:$0xff]
  %v336 = vld [vmem:[%s2 + $0x60] sm:$0x3]
  %v337 = vld [vmem:[%s2 + $0x68] sm:$0x3]
  %v339 = vsel %vm56, %v325, 0
  %v342 = vsel %vm56, %v327, 0
  %v345 = vsel %vm56, %v329, 0
  %v348 = vsel %vm56, %v331, 0
  %v351 = vsel %vm56, %v333, 0
  %v354 = vsel %vm56, %v335, 0
  %v357 = vsel %vm56, %v337, 0
  %359 = vmatprep.subr.mxu0 0.0
  %360 = vmatpush1.msra.mxu0 %v38
  %361 = vmatprep.subr.mxu0 0.0
  %362 = vmatpush1.msra.mxu0 %v37
  %363 = vmatprep.subr.mxu0 0.0
  %364 = vmatpush1.msra.mxu0 %v36
  %365 = vmatprep.subr.mxu0 0.0
  %366 = vmatpush1.msra.mxu0 %v35
  %367 = vmatprep.subr.mxu0 0.0
  %368 = vmatpush1.msra.mxu0 %v34
  %369 = vmatprep.subr.mxu0 0.0
  %370 = vmatpush1.msra.mxu0 %v33
  %371 = vmatprep.subr.mxu0 0.0
  %372 = vmatpush1.msra.mxu0 %v32
  %373 = vmatprep.subr.mxu0 0.0
  %374 = vmatpush1.msra.mxu0 %v31
  %375 = vmatprep.subr.mxu0 0.0
  %376 = vmatpush1.msra.mxu0 %v30
  %377 = vmatprep.subr.mxu0 0.0
  %378 = vmatpush1.msra.mxu0 %v29
  %379 = vmatprep.subr.mxu0 0.0
  %380 = vmatpush1.msra.mxu0 %v28
  %381 = vmatprep.subr.mxu0 0.0
  %382 = vmatpush1.msra.mxu0 %v27
  %383 = vmatprep.subr.mxu0 0.0
  %384 = vmatpush1.msra.mxu0 %v26
  %385 = vmatprep.subr.mxu0 0.0
  %386 = vmatpush1.msra.mxu0 %v25
  %387 = vmatprep.subr.mxu0 0.0
  %388 = vmatpush1.msra.mxu0 %v24
  %389 = vmatprep.subr.mxu0 0.0
  %390 = vmatpush1.msra.mxu0 %v23
  %391 = vmatprep.subr.mxu0 0.0
  %392 = vmatpush2.msra.mxu0 0.0
  %393 = vmatprep.subr.mxu0 0.0
  %394 = vmatpush2.msra.mxu0 0.0
  %395 = vmatprep.subr.mxu0 0.0
  %396 = vmatpush2.msra.mxu0 0.0
  %397 = vmatprep.subr.mxu0 0.0
  %398 = vmatpush2.msra.mxu0 0.0
  %399 = vmatprep.subr.mxu0 0.0
  %400 = vmatpush2.msra.mxu0 0.0
  %401 = vmatprep.subr.mxu0 0.0
  %402 = vmatpush2.msra.mxu0 0.0
  %403 = vmatprep.subr.mxu0 0.0
  %404 = vmatpush2.msra.mxu0 0.0
  %405 = vmatprep.subr.mxu0 0.0
  %406 = vmatpush2.msra.mxu0 0.0
  %407 = vmatprep.subr.mxu0 0.0
  %408 = vmatpush2.msra.mxu0 0.0
  %409 = vmatprep.subr.mxu0 0.0
  %410 = vmatpush2.msra.mxu0 0.0
  %411 = vmatprep.subr.mxu0 0.0
  %412 = vmatpush2.msra.mxu0 0.0
  %413 = vmatprep.subr.mxu0 0.0
  %414 = vmatpush2.msra.mxu0 0.0
  %415 = vmatprep.subr.mxu0 0.0
  %416 = vmatpush2.msra.mxu0 0.0
  %417 = vmatprep.subr.mxu0 0.0
  %418 = vmatpush2.msra.mxu0 %v80
  %419 = vmatprep.subr.mxu0 0.0
  %420 = vmatpush2.msra.mxu0 %v40
  %421 = vmatprep.subr.mxu0 0.0
  %422 = vmatpush2.msra.mxu0 %v39
  %423 = vmatprep.mubr.f32.mxu0 %v339
  %424 = vmatmul.mubr.f32.gmra.mxu0 %v324
  %v425 = vpop.f32.mrf.mxu0
  %v426 = vadd.f32 0.0, %v425
  %v427 = vpop.f32.mrf.mxu0
  %428 = vmatprep.mubr.f32.mxu0 %v342
  %429 = vmatmul.mubr.f32.gmra.mxu0 %v326
  %v430 = vpop.f32.mrf.mxu0
  %v431 = vadd.f32 0.0, %v430
  %v432 = vpop.f32.mrf.mxu0
  %433 = vmatprep.mubr.f32.mxu0 %v345
  %434 = vmatmul.mubr.f32.gmra.mxu0 %v328
  %v435 = vpop.f32.mrf.mxu0
  %v436 = vadd.f32 0.0, %v435
  %v437 = vpop.f32.mrf.mxu0
  %438 = vmatprep.mubr.f32.mxu0 %v348
  %439 = vmatmul.mubr.f32.gmra.mxu0 %v330
  %v440 = vpop.f32.mrf.mxu0
  %v441 = vadd.f32 0.0, %v440
  %v442 = vpop.f32.mrf.mxu0
  %443 = vmatprep.mubr.f32.mxu0 %v351
  %444 = vmatmul.mubr.f32.gmra.mxu0 %v332
  %v445 = vpop.f32.mrf.mxu0
  %v446 = vadd.f32 0.0, %v445
  %v447 = vpop.f32.mrf.mxu0
  %448 = vmatprep.mubr.f32.mxu0 %v354
  %449 = vmatmul.mubr.f32.gmra.mxu0 %v334
  %v450 = vpop.f32.mrf.mxu0
  %v451 = vadd.f32 0.0, %v450
  %v452 = vpop.f32.mrf.mxu0
  %453 = vmatprep.mubr.f32.mxu0 %v357
  %454 = vmatmul.mubr.f32.gmra.mxu0 %v336
  %v455 = vpop.f32.mrf.mxu0
  %v456 = vadd.f32 0.0, %v455
  %v457 = vpop.f32.mrf.mxu0
  %458 = vdwg.mxu0
  %v459 = vmax.f32 %v317, %v426
  %v460 = vmax.f32 %v318, %v431
  %v461 = vmax.f32 %v319, %v436
  %v462 = vmax.f32 %v320, %v441
  %v463 = vmax.f32 %v321, %v446
  %v464 = vmax.f32 %v322, %v451
  %v465 = vmax.f32 %v323, %v456
  %v466 = vld [vmem:[%s3] sm:$0xff]
  %v467 = vld [vmem:[%s3 + $0x8] sm:$0xff]
  %v468 = vld [vmem:[%s3 + $0x10] sm:$0xff]
  %v469 = vld [vmem:[%s3 + $0x18] sm:$0xff]
  %v470 = vld [vmem:[%s3 + $0x20] sm:$0xff]
  %v471 = vld [vmem:[%s3 + $0x28] sm:$0xff]
  %v472 = vld [vmem:[%s3 + $0x30] sm:$0xff]
  %v473 = vld [vmem:[%s3 + $0x38] sm:$0xff]
  %v474 = vld [vmem:[%s3 + $0x40] sm:$0xff]
  %v475 = vld [vmem:[%s3 + $0x48] sm:$0xff]
  %v476 = vld [vmem:[%s3 + $0x50] sm:$0xff]
  %v477 = vld [vmem:[%s3 + $0x58] sm:$0xff]
  %v478 = vld [vmem:[%s3 + $0x60] sm:$0x3]
  %v479 = vld [vmem:[%s3 + $0x68] sm:$0x3]
  %v481 = vsel %vm56, %v467, 0
  %v484 = vsel %vm56, %v469, 0
  %v487 = vsel %vm56, %v471, 0
  %v490 = vsel %vm56, %v473, 0
  %v493 = vsel %vm56, %v475, 0
  %v496 = vsel %vm56, %v477, 0
  %v499 = vsel %vm56, %v479, 0
  %501 = vmatprep.subr.mxu0 0.0
  %502 = vmatpush1.msra.mxu0 %v38
  %503 = vmatprep.subr.mxu0 0.0
  %504 = vmatpush1.msra.mxu0 %v37
  %505 = vmatprep.subr.mxu0 0.0
  %506 = vmatpush1.msra.mxu0 %v36
  %507 = vmatprep.subr.mxu0 0.0
  %508 = vmatpush1.msra.mxu0 %v35
  %509 = vmatprep.subr.mxu0 0.0
  %510 = vmatpush1.msra.mxu0 %v34
  %511 = vmatprep.subr.mxu0 0.0
  %512 = vmatpush1.msra.mxu0 %v33
  %513 = vmatprep.subr.mxu0 0.0
  %514 = vmatpush1.msra.mxu0 %v32
  %515 = vmatprep.subr.mxu0 0.0
  %516 = vmatpush1.msra.mxu0 %v31
  %517 = vmatprep.subr.mxu0 0.0
  %518 = vmatpush1.msra.mxu0 %v30
  %519 = vmatprep.subr.mxu0 0.0
  %520 = vmatpush1.msra.mxu0 %v29
  %521 = vmatprep.subr.mxu0 0.0
  %522 = vmatpush1.msra.mxu0 %v28
  %523 = vmatprep.subr.mxu0 0.0
  %524 = vmatpush1.msra.mxu0 %v27
  %525 = vmatprep.subr.mxu0 0.0
  %526 = vmatpush1.msra.mxu0 %v26
  %527 = vmatprep.subr.mxu0 0.0
  %528 = vmatpush1.msra.mxu0 %v25
  %529 = vmatprep.subr.mxu0 0.0
  %530 = vmatpush1.msra.mxu0 %v24
  %531 = vmatprep.subr.mxu0 0.0
  %532 = vmatpush1.msra.mxu0 %v23
  %533 = vmatprep.subr.mxu0 0.0
  %534 = vmatpush2.msra.mxu0 0.0
  %535 = vmatprep.subr.mxu0 0.0
  %536 = vmatpush2.msra.mxu0 0.0
  %537 = vmatprep.subr.mxu0 0.0
  %538 = vmatpush2.msra.mxu0 0.0
  %539 = vmatprep.subr.mxu0 0.0
  %540 = vmatpush2.msra.mxu0 0.0
  %541 = vmatprep.subr.mxu0 0.0
  %542 = vmatpush2.msra.mxu0 0.0
  %543 = vmatprep.subr.mxu0 0.0
  %544 = vmatpush2.msra.mxu0 0.0
  %545 = vmatprep.subr.mxu0 0.0
  %546 = vmatpush2.msra.mxu0 0.0
  %547 = vmatprep.subr.mxu0 0.0
  %548 = vmatpush2.msra.mxu0 0.0
  %549 = vmatprep.subr.mxu0 0.0
  %550 = vmatpush2.msra.mxu0 0.0
  %551 = vmatprep.subr.mxu0 0.0
  %552 = vmatpush2.msra.mxu0 0.0
  %553 = vmatprep.subr.mxu0 0.0
  %554 = vmatpush2.msra.mxu0 0.0
  %555 = vmatprep.subr.mxu0 0.0
  %556 = vmatpush2.msra.mxu0 0.0
  %557 = vmatprep.subr.mxu0 0.0
  %558 = vmatpush2.msra.mxu0 0.0
  %559 = vmatprep.subr.mxu0 0.0
  %560 = vmatpush2.msra.mxu0 %v80
  %561 = vmatprep.subr.mxu0 0.0
  %562 = vmatpush2.msra.mxu0 %v40
  %563 = vmatprep.subr.mxu0 0.0
  %564 = vmatpush2.msra.mxu0 %v39
  %565 = vmatprep.mubr.f32.mxu0 %v481
  %566 = vmatmul.mubr.f32.gmra.mxu0 %v466
  %v567 = vpop.f32.mrf.mxu0
  %v568 = vadd.f32 0.0, %v567
  %v569 = vpop.f32.mrf.mxu0
  %570 = vmatprep.mubr.f32.mxu0 %v484
  %571 = vmatmul.mubr.f32.gmra.mxu0 %v468
  %v572 = vpop.f32.mrf.mxu0
  %v573 = vadd.f32 0.0, %v572
  %v574 = vpop.f32.mrf.mxu0
  %575 = vmatprep.mubr.f32.mxu0 %v487
  %576 = vmatmul.mubr.f32.gmra.mxu0 %v470
  %v577 = vpop.f32.mrf.mxu0
  %v578 = vadd.f32 0.0, %v577
  %v579 = vpop.f32.mrf.mxu0
  %580 = vmatprep.mubr.f32.mxu0 %v490
  %581 = vmatmul.mubr.f32.gmra.mxu0 %v472
  %v582 = vpop.f32.mrf.mxu0
  %v583 = vadd.f32 0.0, %v582
  %v584 = vpop.f32.mrf.mxu0
  %585 = vmatprep.mubr.f32.mxu0 %v493
  %586 = vmatmul.mubr.f32.gmra.mxu0 %v474
  %v587 = vpop.f32.mrf.mxu0
  %v588 = vadd.f32 0.0, %v587
  %v589 = vpop.f32.mrf.mxu0
  %590 = vmatprep.mubr.f32.mxu0 %v496
  %591 = vmatmul.mubr.f32.gmra.mxu0 %v476
  %v592 = vpop.f32.mrf.mxu0
  %v593 = vadd.f32 0.0, %v592
  %v594 = vpop.f32.mrf.mxu0
  %595 = vmatprep.mubr.f32.mxu0 %v499
  %596 = vmatmul.mubr.f32.gmra.mxu0 %v478
  %v597 = vpop.f32.mrf.mxu0
  %v598 = vadd.f32 0.0, %v597
  %v599 = vpop.f32.mrf.mxu0
  %600 = vdwg.mxu0
  %v601 = vmax.f32 %v459, %v568
  %v602 = vmax.f32 %v460, %v573
  %v603 = vmax.f32 %v461, %v578
  %v604 = vmax.f32 %v462, %v583
  %v605 = vmax.f32 %v463, %v588
  %v606 = vmax.f32 %v464, %v593
  %v607 = vmax.f32 %v465, %v598
  %v608 = vld [vmem:[%s5] sm:$0x1]
  %v610 = vlaneseq
  %v611 = vshrl.u32 %v610, 7
  %v612 = vsub.s32 0, %v611
  %v613 = vrot.slane %v608, %v612
  %v615 = vadd.f32 %v601, %v613
  %v616 = vadd.f32 %v602, %v613
  %v617 = vadd.f32 %v603, %v613
  %v618 = vadd.f32 %v604, %v613
  %v619 = vadd.f32 %v605, %v613
  %v620 = vadd.f32 %v606, %v613
  %v621 = vadd.f32 %v607, %v613
  %v622 = vmax.f32 %v615, 0.0
  %v623 = vmax.f32 %v616, 0.0
  %v624 = vmax.f32 %v617, 0.0
  %v625 = vmax.f32 %v618, 0.0
  %v626 = vmax.f32 %v619, 0.0
  %v627 = vmax.f32 %v620, 0.0
  %v628 = vmax.f32 %v621, 0.0
  %629 = vst [vmem:[%s6] sm:$0xff] %v622
  %630 = vst [vmem:[%s6 + $0x8] sm:$0xff] %v623
  %631 = vst [vmem:[%s6 + $0x10] sm:$0xff] %v624
  %632 = vst [vmem:[%s6 + $0x18] sm:$0xff] %v625
  %633 = vst [vmem:[%s6 + $0x20] sm:$0xff] %v626
  %634 = vst [vmem:[%s6 + $0x28] sm:$0xff] %v627
  %635 = vst [vmem:[%s6 + $0x30] sm:$0x3] %v628
  // Predicated region
  $region26: #{lenet_forward.4} parent=0 // pred_check
    _
  $region27: #{lenet_forward.4} parent=0 // pred_check_branch
    %637 = sbr.rel (0) target = $region29
  $region28: #{lenet_forward.4} parent=0 // pred_region
    _
  $region29: #{lenet_forward.4} parent=0 // pred_fallthru
    _
  // Predicated region
  $region30: #{lenet_forward.4} parent=0 // pred_check
    _
  $region31: #{lenet_forward.4} parent=0 // pred_check_branch
    %639 = sbr.rel (0) target = $region33
  $region32: #{lenet_forward.4} parent=0 // pred_region
    _
  $region33: #{lenet_forward.4} parent=0 // pred_fallthru
    _

// kernel: lenet_forward.5
$region0: #{lenet_forward.5}
  #allocation0 [shape = 'u32[]', space=smem, size = 0x4, offset = 0x4, fixed_abs, tag = 'smem constant byte address 0x4 - core index']
  #allocation1 [shape = 'u32[144,128]{1,0:T(1,128)}', space=vmem, size = 0x12000, scoped, tag = 'internal scratch']
  %s0 = inlined_call_operand.vmem [shape: f32[2,400], index: 0, kind: input, shape index: {}]
  %s1 = inlined_call_operand.vmem [shape: f32[400,128], index: 1, kind: input, shape index: {}]
  %s2 = inlined_call_operand.vmem [shape: f32[1,128], index: 2, kind: input, shape index: {}]
  %s3 = inlined_call_operand.vmem [shape: f32[128,128], index: 3, kind: input, shape index: {}]
  %s4 = inlined_call_operand.vmem [shape: f32[1,128], index: 4, kind: input, shape index: {}]
  %s5 = inlined_call_operand.vmem [shape: f32[128,128], index: 5, kind: input, shape index: {}]
  %s6 = inlined_call_operand.vmem [shape: f32[1,128], index: 6, kind: input, shape index: {}]
  %s7 = inlined_call_operand.hbm [shape: f32[2,128], index: 7, kind: output, shape index: {}]
  %s8 = sld [smem:[#allocation0]]
  $region38: #{lenet_forward.5} parent=0
    _
  %s10 = ssub.s32 1, %s8
  %s11 = scalar_select 0, %s10, %s8
  $region1: #{lenet_forward.5} parent=0
    #allocation2 [shape = 'u8[1024]{0}', space=vmem, size = 0x400, scoped, tag = 'output window, operand 0, single buffered']
    #allocation3 [shape = 's32[1]{0}', space=sflag, size = 0x4, scoped, tag = 'scoped memory for lenet_forward.5']
    %12 = vsyncpa [#allocation3], 0
    // Predicated region
    $region2: #{lenet_forward.5} parent=1 // pred_check
      _
    $region3: #{lenet_forward.5} parent=1 // pred_check_branch
      %14 = sbr.rel (0) target = $region5
    $region4: #{lenet_forward.5} parent=1 // pred_region
      _
    $region5: #{lenet_forward.5} parent=1 // pred_fallthru
      _
    // Predicated region
    $region6: #{lenet_forward.5} parent=1 // pred_check
      _
    $region7: #{lenet_forward.5} parent=1 // pred_check_branch
      %16 = sbr.rel (0) target = $region9
    $region8: #{lenet_forward.5} parent=1 // pred_region
      _
    $region9: #{lenet_forward.5} parent=1 // pred_fallthru
      _
    // Predicated region
    $region10: #{lenet_forward.5} parent=1 // pred_check
      _
    $region11: #{lenet_forward.5} parent=1 // pred_check_branch
      %18 = sbr.rel (0) target = $region13
    $region12: #{lenet_forward.5} parent=1 // pred_region
      _
    $region13: #{lenet_forward.5} parent=1 // pred_fallthru
      _
    // Predicated region
    $region14: #{lenet_forward.5} parent=1 // pred_check
      _
    $region15: #{lenet_forward.5} parent=1 // pred_check_branch
      %20 = sbr.rel (0) target = $region17
    $region16: #{lenet_forward.5} parent=1 // pred_region
      _
    $region17: #{lenet_forward.5} parent=1 // pred_fallthru
      _
    // Predicated region
    $region18: #{lenet_forward.5} parent=1 // pred_check
      _
    $region19: #{lenet_forward.5} parent=1 // pred_check_branch
      %22 = sbr.rel (0) target = $region21
    $region20: #{lenet_forward.5} parent=1 // pred_region
      _
    $region21: #{lenet_forward.5} parent=1 // pred_fallthru
      _
    // Predicated region
    $region22: #{lenet_forward.5} parent=1 // pred_check
      _
    $region23: #{lenet_forward.5} parent=1 // pred_check_branch
      %24 = sbr.rel (0) target = $region25
    $region24: #{lenet_forward.5} parent=1 // pred_region
      _
    $region25: #{lenet_forward.5} parent=1 // pred_fallthru
      _
    // Predicated region
    $region26: #{lenet_forward.5} parent=1 // pred_check
      _
    $region27: #{lenet_forward.5} parent=1 // pred_check_branch
      %26 = sbr.rel (0) target = $region29
    $region28: #{lenet_forward.5} parent=1 // pred_region
      _
    $region29: #{lenet_forward.5} parent=1 // pred_fallthru
      _
    %v27 = vld [vmem:[%s0] sm:$0xff]
    %v28 = vld [vmem:[%s1] sm:$0xff]
    %v29 = vld [vmem:[%s1 + $0x8] sm:$0xff]
    %v30 = vld [vmem:[%s1 + $0x10] sm:$0xff]
    %v31 = vld [vmem:[%s1 + $0x18] sm:$0xff]
    %v32 = vld [vmem:[%s1 + $0x20] sm:$0xff]
    %v33 = vld [vmem:[%s1 + $0x28] sm:$0xff]
    %v34 = vld [vmem:[%s1 + $0x30] sm:$0xff]
    %v35 = vld [vmem:[%s1 + $0x38] sm:$0xff]
    %v36 = vld [vmem:[%s1 + $0x40] sm:$0xff]
    %v37 = vld [vmem:[%s1 + $0x48] sm:$0xff]
    %v38 = vld [vmem:[%s1 + $0x50] sm:$0xff]
    %v39 = vld [vmem:[%s1 + $0x58] sm:$0xff]
    %v40 = vld [vmem:[%s1 + $0x60] sm:$0xff]
    %v41 = vld [vmem:[%s1 + $0x68] sm:$0xff]
    %v42 = vld [vmem:[%s1 + $0x70] sm:$0xff]
    %v43 = vld [vmem:[%s1 + $0x78] sm:$0xff]
    %v44 = vld [vmem:[%s1 + $0x80] sm:$0xff]
    %v45 = vld [vmem:[%s1 + $0x88] sm:$0xff]
    %v46 = vld [vmem:[%s1 + $0x90] sm:$0xff]
    %v47 = vld [vmem:[%s1 + $0x98] sm:$0xff]
    %v48 = vld [vmem:[%s1 + $0xa0] sm:$0xff]
    %v49 = vld [vmem:[%s1 + $0xa8] sm:$0xff]
    %v50 = vld [vmem:[%s1 + $0xb0] sm:$0xff]
    %v51 = vld [vmem:[%s1 + $0xb8] sm:$0xff]
    %v52 = vld [vmem:[%s1 + $0xc0] sm:$0xff]
    %v53 = vld [vmem:[%s1 + $0xc8] sm:$0xff]
    %v54 = vld [vmem:[%s1 + $0xd0] sm:$0xff]
    %v55 = vld [vmem:[%s1 + $0xd8] sm:$0xff]
    %v56 = vld [vmem:[%s1 + $0xe0] sm:$0xff]
    %v57 = vld [vmem:[%s1 + $0xe8] sm:$0xff]
    %v58 = vld [vmem:[%s1 + $0xf0] sm:$0xff]
    %v59 = vld [vmem:[%s1 + $0xf8] sm:$0xff]
    %v60 = vld [vmem:[%s1 + $0x100] sm:$0xff]
    %v61 = vld [vmem:[%s1 + $0x108] sm:$0xff]
    %v62 = vld [vmem:[%s1 + $0x110] sm:$0xff]
    %v63 = vld [vmem:[%s1 + $0x118] sm:$0xff]
    %v64 = vld [vmem:[%s1 + $0x120] sm:$0xff]
    %v65 = vld [vmem:[%s1 + $0x128] sm:$0xff]
    %v66 = vld [vmem:[%s1 + $0x130] sm:$0xff]
    %v67 = vld [vmem:[%s1 + $0x138] sm:$0xff]
    %v68 = vld [vmem:[%s1 + $0x140] sm:$0xff]
    %v69 = vld [vmem:[%s1 + $0x148] sm:$0xff]
    %v70 = vld [vmem:[%s1 + $0x150] sm:$0xff]
    %v71 = vld [vmem:[%s1 + $0x158] sm:$0xff]
    %v72 = vld [vmem:[%s1 + $0x160] sm:$0xff]
    %v73 = vld [vmem:[%s1 + $0x168] sm:$0xff]
    %v74 = vld [vmem:[%s1 + $0x170] sm:$0xff]
    %v75 = vld [vmem:[%s1 + $0x178] sm:$0xff]
    %v76 = vld [vmem:[%s1 + $0x180] sm:$0xff]
    %v77 = vld [vmem:[%s1 + $0x188] sm:$0xff]
    %v78 = vld [vmem:[%s2] sm:$0x1]
    %v80 = vlaneseq
    %v81 = vshrl.u32 %v80, 7
    %v82 = vsub.s32 0, %v81
    %v83 = vrot.slane %v78, %v82
    %v86 = vcombine.high %v27, %v27
    %v88 = vunpack.c.l.s4 1983009808
    %v89 = vunpack.c.0.s8 %v88
    %v90 = vlaneseq
    %v91 = vshrl.u32 %v90, 7
    %v92 = vsub.s32 %v89, %v91
    %v93 = vrot.slane %v27, %v92
    %v95 = vunpack.c.l.s4 1983009808
    %v96 = vunpack.c.0.s8 %v95
    %v97 = vlaneseq
    %v98 = vshrl.u32 %v97, 7
    %v99 = vsub.s32 %v96, %v98
    %v100 = vrot.slane %v86, %v99
    %v101 = vcombine.high %v93, %v93
    %v102 = vcombine.high %v100, %v100
    %vm106 = vcmask 130048
    %v107 = vsel %vm106, %v102, 0
    %109 = vmatprep.subr.mxu0 0.0
    %110 = vmatpush1.msra.mxu0 %v43
    %111 = vmatprep.subr.mxu0 0.0
    %112 = vmatpush1.msra.mxu0 %v42
    %113 = vmatprep.subr.mxu0 0.0
    %114 = vmatpush1.msra.mxu0 %v41
    %115 = vmatprep.subr.mxu0 0.0
    %116 = vmatpush1.msra.mxu0 %v40
    %117 = vmatprep.subr.mxu0 0.0
    %118 = vmatpush1.msra.mxu0 %v39
    %119 = vmatprep.subr.mxu0 0.0
    %120 = vmatpush1.msra.mxu0 %v38
    %121 = vmatprep.subr.mxu0 0.0
    %122 = vmatpush1.msra.mxu0 %v37
    %123 = vmatprep.subr.mxu0 0.0
    %124 = vmatpush1.msra.mxu0 %v36
    %125 = vmatprep.subr.mxu0 0.0
    %126 = vmatpush1.msra.mxu0 %v35
    %127 = vmatprep.subr.mxu0 0.0
    %128 = vmatpush1.msra.mxu0 %v34
    %129 = vmatprep.subr.mxu0 0.0
    %130 = vmatpush1.msra.mxu0 %v33
    %131 = vmatprep.subr.mxu0 0.0
    %132 = vmatpush1.msra.mxu0 %v32
    %133 = vmatprep.subr.mxu0 0.0
    %134 = vmatpush1.msra.mxu0 %v31
    %135 = vmatprep.subr.mxu0 0.0
    %136 = vmatpush1.msra.mxu0 %v30
    %137 = vmatprep.subr.mxu0 0.0
    %138 = vmatpush1.msra.mxu0 %v29
    %139 = vmatprep.subr.mxu0 0.0
    %140 = vmatpush1.msra.mxu0 %v28
    %141 = vmatprep.subr.mxu0 0.0
    %142 = vmatpush2.msra.mxu0 %v59
    %143 = vmatprep.subr.mxu0 0.0
    %144 = vmatpush2.msra.mxu0 %v58
    %145 = vmatprep.subr.mxu0 0.0
    %146 = vmatpush2.msra.mxu0 %v57
    %147 = vmatprep.subr.mxu0 0.0
    %148 = vmatpush2.msra.mxu0 %v56
    %149 = vmatprep.subr.mxu0 0.0
    %150 = vmatpush2.msra.mxu0 %v55
    %151 = vmatprep.subr.mxu0 0.0
    %152 = vmatpush2.msra.mxu0 %v54
    %153 = vmatprep.subr.mxu0 0.0
    %154 = vmatpush2.msra.mxu0 %v53
    %155 = vmatprep.subr.mxu0 0.0
    %156 = vmatpush2.msra.mxu0 %v52
    %157 = vmatprep.subr.mxu0 0.0
    %158 = vmatpush2.msra.mxu0 %v51
    %159 = vmatprep.subr.mxu0 0.0
    %160 = vmatpush2.msra.mxu0 %v50
    %161 = vmatprep.subr.mxu0 0.0
    %162 = vmatpush2.msra.mxu0 %v49
    %163 = vmatprep.subr.mxu0 0.0
    %164 = vmatpush2.msra.mxu0 %v48
    %165 = vmatprep.subr.mxu0 0.0
    %166 = vmatpush2.msra.mxu0 %v47
    %167 = vmatprep.subr.mxu0 0.0
    %168 = vmatpush2.msra.mxu0 %v46
    %169 = vmatprep.subr.mxu0 0.0
    %170 = vmatpush2.msra.mxu0 %v45
    %171 = vmatprep.subr.mxu0 0.0
    %172 = vmatpush2.msra.mxu0 %v44
    %173 = vmatprep.mubr.f32.mxu0 %v101
    %174 = vmatmul.mubr.f32.gmra.mxu0 %v93
    %v175 = vpop.f32.mrf.mxu0
    %v176 = vadd.f32 %v83, %v175
    %v177 = vpop.f32.mrf.mxu0
    %178 = vdwg.mxu0
    %179 = vmatprep.subr.mxu0 0.0
    %180 = vmatpush1.msra.mxu0 %v75
    %181 = vmatprep.subr.mxu0 0.0
    %182 = vmatpush1.msra.mxu0 %v74
    %183 = vmatprep.subr.mxu0 0.0
    %184 = vmatpush1.msra.mxu0 %v73
    %185 = vmatprep.subr.mxu0 0.0
    %186 = vmatpush1.msra.mxu0 %v72
    %187 = vmatprep.subr.mxu0 0.0
    %188 = vmatpush1.msra.mxu0 %v71
    %189 = vmatprep.subr.mxu0 0.0
    %190 = vmatpush1.msra.mxu0 %v70
    %191 = vmatprep.subr.mxu0 0.0
    %192 = vmatpush1.msra.mxu0 %v69
    %193 = vmatprep.subr.mxu0 0.0
    %194 = vmatpush1.msra.mxu0 %v68
    %195 = vmatprep.subr.mxu0 0.0
    %196 = vmatpush1.msra.mxu0 %v67
    %197 = vmatprep.subr.mxu0 0.0
    %198 = vmatpush1.msra.mxu0 %v66
    %199 = vmatprep.subr.mxu0 0.0
    %200 = vmatpush1.msra.mxu0 %v65
    %201 = vmatprep.subr.mxu0 0.0
    %202 = vmatpush1.msra.mxu0 %v64
    %203 = vmatprep.subr.mxu0 0.0
    %204 = vmatpush1.msra.mxu0 %v63
    %205 = vmatprep.subr.mxu0 0.0
    %206 = vmatpush1.msra.mxu0 %v62
    %207 = vmatprep.subr.mxu0 0.0
    %208 = vmatpush1.msra.mxu0 %v61
    %209 = vmatprep.subr.mxu0 0.0
    %210 = vmatpush1.msra.mxu0 %v60
    %211 = vmatprep.subr.mxu0 0.0
    %212 = vmatpush2.msra.mxu0 0.0
    %213 = vmatprep.subr.mxu0 0.0
    %214 = vmatpush2.msra.mxu0 0.0
    %215 = vmatprep.subr.mxu0 0.0
    %216 = vmatpush2.msra.mxu0 0.0
    %217 = vmatprep.subr.mxu0 0.0
    %218 = vmatpush2.msra.mxu0 0.0
    %219 = vmatprep.subr.mxu0 0.0
    %220 = vmatpush2.msra.mxu0 0.0
    %221 = vmatprep.subr.mxu0 0.0
    %222 = vmatpush2.msra.mxu0 0.0
    %223 = vmatprep.subr.mxu0 0.0
    %224 = vmatpush2.msra.mxu0 0.0
    %225 = vmatprep.subr.mxu0 0.0
    %226 = vmatpush2.msra.mxu0 0.0
    %227 = vmatprep.subr.mxu0 0.0
    %228 = vmatpush2.msra.mxu0 0.0
    %229 = vmatprep.subr.mxu0 0.0
    %230 = vmatpush2.msra.mxu0 0.0
    %231 = vmatprep.subr.mxu0 0.0
    %232 = vmatpush2.msra.mxu0 0.0
    %233 = vmatprep.subr.mxu0 0.0
    %234 = vmatpush2.msra.mxu0 0.0
    %235 = vmatprep.subr.mxu0 0.0
    %236 = vmatpush2.msra.mxu0 0.0
    %237 = vmatprep.subr.mxu0 0.0
    %238 = vmatpush2.msra.mxu0 0.0
    %239 = vmatprep.subr.mxu0 0.0
    %240 = vmatpush2.msra.mxu0 %v77
    %241 = vmatprep.subr.mxu0 0.0
    %242 = vmatpush2.msra.mxu0 %v76
    %243 = vmatprep.mubr.f32.mxu0 %v107
    %244 = vmatmul.mubr.f32.gmra.mxu0 %v100
    %v245 = vpop.f32.mrf.mxu0
    %v246 = vadd.f32 %v176, %v245
    %v247 = vpop.f32.mrf.mxu0
    %248 = vdwg.mxu0
    %v249 = vmax.f32 %v246, 0.0
    %v250 = vld [vmem:[%s3] sm:$0xff]
    %v251 = vld [vmem:[%s3 + $0x8] sm:$0xff]
    %v252 = vld [vmem:[%s3 + $0x10] sm:$0xff]
    %v253 = vld [vmem:[%s3 + $0x18] sm:$0xff]
    %v254 = vld [vmem:[%s3 + $0x20] sm:$0xff]
    %v255 = vld [vmem:[%s3 + $0x28] sm:$0xff]
    %v256 = vld [vmem:[%s3 + $0x30] sm:$0xff]
    %v257 = vld [vmem:[%s3 + $0x38] sm:$0xff]
    %v258 = vld [vmem:[%s3 + $0x40] sm:$0xff]
    %v259 = vld [vmem:[%s3 + $0x48] sm:$0xff]
    %v260 = vld [vmem:[%s3 + $0x50] sm:$0xff]
    %v261 = vld [vmem:[%s3 + $0x58] sm:$0xff]
    %v262 = vld [vmem:[%s3 + $0x60] sm:$0xff]
    %v263 = vld [vmem:[%s3 + $0x68] sm:$0xff]
    %v264 = vld [vmem:[%s3 + $0x70] sm:$0xff]
    %v265 = vld [vmem:[%s3 + $0x78] sm:$0xff]
    %v266 = vld [vmem:[%s4] sm:$0x1]
    %v268 = vlaneseq
    %v269 = vshrl.u32 %v268, 7
    %v270 = vsub.s32 0, %v269
    %v271 = vrot.slane %v266, %v270
    %273 = vmatprep.subr.mxu0 0.0
    %274 = vmatpush1.msra.mxu0 %v265
    %275 = vmatprep.subr.mxu0 0.0
    %276 = vmatpush1.msra.mxu0 %v264
    %277 = vmatprep.subr.mxu0 0.0
    %278 = vmatpush1.msra.mxu0 %v263
    %279 = vmatprep.subr.mxu0 0.0
    %280 = vmatpush1.msra.mxu0 %v262
    %281 = vmatprep.subr.mxu0 0.0
    %282 = vmatpush1.msra.mxu0 %v261
    %283 = vmatprep.subr.mxu0 0.0
    %284 = vmatpush1.msra.mxu0 %v260
    %285 = vmatprep.subr.mxu0 0.0
    %286 = vmatpush1.msra.mxu0 %v259
    %287 = vmatprep.subr.mxu0 0.0
    %288 = vmatpush1.msra.mxu0 %v258
    %289 = vmatprep.subr.mxu0 0.0
    %290 = vmatpush1.msra.mxu0 %v257
    %291 = vmatprep.subr.mxu0 0.0
    %292 = vmatpush1.msra.mxu0 %v256
    %293 = vmatprep.subr.mxu0 0.0
    %294 = vmatpush1.msra.mxu0 %v255
    %295 = vmatprep.subr.mxu0 0.0
    %296 = vmatpush1.msra.mxu0 %v254
    %297 = vmatprep.subr.mxu0 0.0
    %298 = vmatpush1.msra.mxu0 %v253
    %299 = vmatprep.subr.mxu0 0.0
    %300 = vmatpush1.msra.mxu0 %v252
    %301 = vmatprep.subr.mxu0 0.0
    %302 = vmatpush1.msra.mxu0 %v251
    %303 = vmatprep.subr.mxu0 0.0
    %304 = vmatpush1.msra.mxu0 %v250
    %305 = vmatprep.subr.mxu0 0.0
    %306 = vmatpush2.msra.mxu0 0.0
    %307 = vmatprep.subr.mxu0 0.0
    %308 = vmatpush2.msra.mxu0 0.0
    %309 = vmatprep.subr.mxu0 0.0
    %310 = vmatpush2.msra.mxu0 0.0
    %311 = vmatprep.subr.mxu0 0.0
    %312 = vmatpush2.msra.mxu0 0.0
    %313 = vmatprep.subr.mxu0 0.0
    %314 = vmatpush2.msra.mxu0 0.0
    %315 = vmatprep.subr.mxu0 0.0
    %316 = vmatpush2.msra.mxu0 0.0
    %317 = vmatprep.subr.mxu0 0.0
    %318 = vmatpush2.msra.mxu0 0.0
    %319 = vmatprep.subr.mxu0 0.0
    %320 = vmatpush2.msra.mxu0 0.0
    %321 = vmatprep.subr.mxu0 0.0
    %322 = vmatpush2.msra.mxu0 0.0
    %323 = vmatprep.subr.mxu0 0.0
    %324 = vmatpush2.msra.mxu0 0.0
    %325 = vmatprep.subr.mxu0 0.0
    %326 = vmatpush2.msra.mxu0 0.0
    %327 = vmatprep.subr.mxu0 0.0
    %328 = vmatpush2.msra.mxu0 0.0
    %329 = vmatprep.subr.mxu0 0.0
    %330 = vmatpush2.msra.mxu0 0.0
    %331 = vmatprep.subr.mxu0 0.0
    %332 = vmatpush2.msra.mxu0 0.0
    %333 = vmatprep.subr.mxu0 0.0
    %334 = vmatpush2.msra.mxu0 0.0
    %335 = vmatprep.subr.mxu0 0.0
    %336 = vmatpush2.msra.mxu0 0.0
    %337 = vmatprep.mubr.f32.mxu0 0.0
    %338 = vmatmul.mubr.f32.gmra.mxu0 %v249
    %v339 = vpop.f32.mrf.mxu0
    %v340 = vadd.f32 %v271, %v339
    %v341 = vpop.f32.mrf.mxu0
    %342 = vdwg.mxu0
    %v343 = vmax.f32 %v340, 0.0
    %v344 = vld [vmem:[%s5] sm:$0xff]
    %v345 = vld [vmem:[%s5 + $0x8] sm:$0xff]
    %v346 = vld [vmem:[%s5 + $0x10] sm:$0xff]
    %v347 = vld [vmem:[%s5 + $0x18] sm:$0xff]
    %v348 = vld [vmem:[%s5 + $0x20] sm:$0xff]
    %v349 = vld [vmem:[%s5 + $0x28] sm:$0xff]
    %v350 = vld [vmem:[%s5 + $0x30] sm:$0xff]
    %v351 = vld [vmem:[%s5 + $0x38] sm:$0xff]
    %v352 = vld [vmem:[%s5 + $0x40] sm:$0xff]
    %v353 = vld [vmem:[%s5 + $0x48] sm:$0xff]
    %v354 = vld [vmem:[%s5 + $0x50] sm:$0xff]
    %v355 = vld [vmem:[%s5 + $0x58] sm:$0xff]
    %v356 = vld [vmem:[%s5 + $0x60] sm:$0xff]
    %v357 = vld [vmem:[%s5 + $0x68] sm:$0xff]
    %v358 = vld [vmem:[%s5 + $0x70] sm:$0xff]
    %v359 = vld [vmem:[%s5 + $0x78] sm:$0xff]
    %v360 = vld [vmem:[%s6] sm:$0x1]
    %v362 = vlaneseq
    %v363 = vshrl.u32 %v362, 7
    %v364 = vsub.s32 0, %v363
    %v365 = vrot.slane %v360, %v364
    %367 = vmatprep.subr.mxu0 0.0
    %368 = vmatpush1.msra.mxu0 %v359
    %369 = vmatprep.subr.mxu0 0.0
    %370 = vmatpush1.msra.mxu0 %v358
    %371 = vmatprep.subr.mxu0 0.0
    %372 = vmatpush1.msra.mxu0 %v357
    %373 = vmatprep.subr.mxu0 0.0
    %374 = vmatpush1.msra.mxu0 %v356
    %375 = vmatprep.subr.mxu0 0.0
    %376 = vmatpush1.msra.mxu0 %v355
    %377 = vmatprep.subr.mxu0 0.0
    %378 = vmatpush1.msra.mxu0 %v354
    %379 = vmatprep.subr.mxu0 0.0
    %380 = vmatpush1.msra.mxu0 %v353
    %381 = vmatprep.subr.mxu0 0.0
    %382 = vmatpush1.msra.mxu0 %v352
    %383 = vmatprep.subr.mxu0 0.0
    %384 = vmatpush1.msra.mxu0 %v351
    %385 = vmatprep.subr.mxu0 0.0
    %386 = vmatpush1.msra.mxu0 %v350
    %387 = vmatprep.subr.mxu0 0.0
    %388 = vmatpush1.msra.mxu0 %v349
    %389 = vmatprep.subr.mxu0 0.0
    %390 = vmatpush1.msra.mxu0 %v348
    %391 = vmatprep.subr.mxu0 0.0
    %392 = vmatpush1.msra.mxu0 %v347
    %393 = vmatprep.subr.mxu0 0.0
    %394 = vmatpush1.msra.mxu0 %v346
    %395 = vmatprep.subr.mxu0 0.0
    %396 = vmatpush1.msra.mxu0 %v345
    %397 = vmatprep.subr.mxu0 0.0
    %398 = vmatpush1.msra.mxu0 %v344
    %399 = vmatprep.subr.mxu0 0.0
    %400 = vmatpush2.msra.mxu0 0.0
    %401 = vmatprep.subr.mxu0 0.0
    %402 = vmatpush2.msra.mxu0 0.0
    %403 = vmatprep.subr.mxu0 0.0
    %404 = vmatpush2.msra.mxu0 0.0
    %405 = vmatprep.subr.mxu0 0.0
    %406 = vmatpush2.msra.mxu0 0.0
    %407 = vmatprep.subr.mxu0 0.0
    %408 = vmatpush2.msra.mxu0 0.0
    %409 = vmatprep.subr.mxu0 0.0
    %410 = vmatpush2.msra.mxu0 0.0
    %411 = vmatprep.subr.mxu0 0.0
    %412 = vmatpush2.msra.mxu0 0.0
    %413 = vmatprep.subr.mxu0 0.0
    %414 = vmatpush2.msra.mxu0 0.0
    %415 = vmatprep.subr.mxu0 0.0
    %416 = vmatpush2.msra.mxu0 0.0
    %417 = vmatprep.subr.mxu0 0.0
    %418 = vmatpush2.msra.mxu0 0.0
    %419 = vmatprep.subr.mxu0 0.0
    %420 = vmatpush2.msra.mxu0 0.0
    %421 = vmatprep.subr.mxu0 0.0
    %422 = vmatpush2.msra.mxu0 0.0
    %423 = vmatprep.subr.mxu0 0.0
    %424 = vmatpush2.msra.mxu0 0.0
    %425 = vmatprep.subr.mxu0 0.0
    %426 = vmatpush2.msra.mxu0 0.0
    %427 = vmatprep.subr.mxu0 0.0
    %428 = vmatpush2.msra.mxu0 0.0
    %429 = vmatprep.subr.mxu0 0.0
    %430 = vmatpush2.msra.mxu0 0.0
    %431 = vmatprep.mubr.f32.mxu0 0.0
    %432 = vmatmul.mubr.f32.gmra.mxu0 %v343
    %v433 = vpop.f32.mrf.mxu0
    %v434 = vadd.f32 %v365, %v433
    %v435 = vpop.f32.mrf.mxu0
    %436 = vdwg.mxu0
    %437 = vst [vmem:[#allocation2] sm:$0x3] %v434
    // Predicated region
    $region30: #{lenet_forward.5} parent=1 // pred_check
      _
    $region31: #{lenet_forward.5} parent=1 // pred_check_branch
      %439 = sbr.rel (0) target = $region33
    $region32: #{lenet_forward.5} parent=1 // pred_region
      %s441 = ssub.s32 32, 32
      %442 = vsyncadd [#allocation3], %s441
      %s444 = sshll.u32 [#allocation2], 4
      %s445 = int_to_ptr.vmem [resolvable:$true] %s444
      %447 = dma.vmem_to_hbm [thread:$0]  %s445, 32, %s7, [#allocation3]
    $region33: #{lenet_forward.5} parent=1 // pred_fallthru
      _
    // Predicated region
    $region34: #{lenet_forward.5} parent=1 // pred_check
      _
    $region35: #{lenet_forward.5} parent=1 // pred_check_branch
      %449 = sbr.rel (0) target = $region37
    $region36: #{lenet_forward.5} parent=1 // pred_region
      %450 = dma.done [#allocation3], 32
    $region37: #{lenet_forward.5} parent=1 // pred_fallthru
      _
    %451 = vsyncpa [#allocation3], 1

</llo_original>
